<compile_context>
chip_gen: v6e
topology: v6e:2x2x1
jax: 0.10.0
libtpu: 0.0.40
codegen_flags: <defaults>
</compile_context>

<pallas_src>
import functools

import jax
import jax.numpy as jnp
from jax.experimental import pallas as pl
from jax.experimental.pallas import tpu as pltpu


def _round_up(x, m):
    return ((x + m - 1) // m) * m


# ----------------------------------------------------------------------------- kernel
def _fused_relu_conv_mm_kernel(x_ref, w_ref, b_ref, o_ref, *, relu_before):
    # x_ref: (K_pad, tn)    im2col columns of one (sample, spatial tile); tn is lane axis
    # w_ref: (C_out, K_pad) reshaped conv weight (resident across the grid)
    # b_ref: (C_out, 1)     conv bias
    # o_ref: (C_out, tn)
    x = x_ref[...]
    if relu_before:                       # fused activate_before='relu' of DownSample
        x = jnp.maximum(x, 0.0)
    y = jnp.dot(w_ref[...], x, preferred_element_type=jnp.float32)
    o_ref[...] = (y + b_ref[...]).astype(o_ref.dtype)


# ------------------------------------------------------------------------ conv wrapper
def conv2d_nchw(x, w, b, *, stride, padding, relu_before):
    """[ReLU ->] Conv2d (NCHW, OIHW) via one tiled Pallas matmul kernel."""
    B, C_in, H, W = x.shape
    C_out, C_in_w, k, k2 = w.shape
    assert C_in_w == C_in and k == k2
    Ho = (H + 2 * padding - k) // stride + 1
    Wo = (W + 2 * padding - k) // stride + 1
    P = Ho * Wo

    # im2col: rows ordered (c, dh, dw) to match w.reshape(C_out, C_in*k*k).
    xp = jnp.pad(x, ((0, 0), (0, 0), (padding, padding), (padding, padding)))
    taps = []
    for dh in range(k):
        for dw in range(k):
            taps.append(xp[:, :, dh:dh + stride * (Ho - 1) + 1:stride,
                               dw:dw + stride * (Wo - 1) + 1:stride])
    xcol = jnp.stack(taps, axis=2).reshape(B, C_in * k * k, P)   # (B, K, P)

    # Pad contraction dim to a sublane multiple; pad spatial dim to a lane-dense tile.
    K = C_in * k * k
    K_pad = _round_up(max(K, 8), 8)                 # extra zero rows are inert in the dot
    tn = 512 if P >= 512 else _round_up(P, 128)     # lane tile: >=128, unmasked stores
    P_pad = _round_up(P, tn)
    xcol = jnp.pad(xcol, ((0, 0), (0, K_pad - K), (0, P_pad - P)))
    w2 = jnp.pad(w.reshape(C_out, K), ((0, 0), (0, K_pad - K)))
    b2 = b.reshape(C_out, 1)

    kernel = functools.partial(_fused_relu_conv_mm_kernel, relu_before=relu_before)
    out = pl.pallas_call(
        kernel,
        out_shape=jax.ShapeDtypeStruct((B, C_out, P_pad), x.dtype),
        grid_spec=pltpu.PrefetchScalarGridSpec(
            num_scalar_prefetch=0,
            grid=(B, P_pad // tn),                                   # (batch, spatial tiles)
            in_specs=[
                pl.BlockSpec((pl.Squeezed(), K_pad, tn), lambda bi, pi: (bi, 0, pi)),
                pl.BlockSpec((C_out, K_pad), lambda bi, pi: (0, 0)),  # weight, resident
                pl.BlockSpec((C_out, 1), lambda bi, pi: (0, 0)),      # bias, resident
            ],
            out_specs=pl.BlockSpec((pl.Squeezed(), C_out, tn), lambda bi, pi: (bi, 0, pi)),
        ),
        compiler_params=pltpu.CompilerParams(
            dimension_semantics=("parallel", "parallel")),
    )(xcol, w2, b2)
    return out[:, :, :P].reshape(B, C_out, Ho, Wo)


# ------------------------------------------------------- module construction + forward
def build_encoder_layer_cfgs(in_ch, up_layer_specs, downsample_layer="downsample"):
    """Mirror EncoderInPatchConvDecoder2.__init__ (partial_conv=False).

    up_layer_specs: list of dicts {"type": "upsample"|"convresblock",
                                   "in_channels": int, "out_channels": int}
    """
    out_channels = [s["out_channels"] for s in up_layer_specs]
    cfgs = []
    in_ch_ = in_ch
    for l in range(len(out_channels), -1, -1):
        out_ch_ = out_channels[l - 1]
        if l == len(out_channels):
            cfgs.append(dict(kind="conv3x3", cin=in_ch_, cout=out_ch_,
                             k=3, stride=1, padding=1, relu_before=False))
        else:
            if l == 0:
                out_ch_ = up_layer_specs[0]["in_channels"]
            if up_layer_specs[l]["type"] == "upsample":
                assert downsample_layer == "downsample"
                # DownSample(activate_before='relu', downsample_type='conv'):
                #   ReLU -> Conv2d(k=4, stride=2, padding=1)
                cfgs.append(dict(kind="downsample", cin=in_ch_, cout=out_ch_,
                                 k=4, stride=2, padding=1, relu_before=True))
            else:
                # TODO(synk): ConvResBlock branch applies nn.Conv1d(3,3,1) to a 4-D tensor
                # in the reference module (ill-typed there too); not instantiated here.
                raise NotImplementedError("ConvResBlock branch not supported")
        in_ch_ = out_ch_
    return cfgs


def encoder_forward(x, cfgs, params):
    """Pallas forward of EncoderInPatchConvDecoder2: dict {str(shape): activation}."""
    out = {}
    for cfg, p in zip(cfgs, params):
        x = conv2d_nchw(x, p["w"], p["b"], stride=cfg["stride"],
                        padding=cfg["padding"], relu_before=cfg["relu_before"])
        out[str(tuple(int(d) for d in x.shape))] = x
        # downsample_layer == 'downsample' -> no trailing ReLU after recording
    return out


# ------------------------------------------------------------------ pure-JAX reference
def _encoder_reference(x, cfgs, params):
    out = {}
    for cfg, p in zip(cfgs, params):
        if cfg["relu_before"]:
            x = jnp.maximum(x, 0.0)
        x = jax.lax.conv_general_dilated(
            x, p["w"], window_strides=(cfg["stride"], cfg["stride"]),
            padding=[(cfg["padding"], cfg["padding"])] * 2,
            dimension_numbers=("NCHW", "OIHW", "NCHW"))
        x = x + p["b"][None, :, None, None]
        out[str(tuple(int(d) for d in x.shape))] = x
    return out


if __name__ == "__main__":
    # Small config: in_ch=3 image, two UpSample entries in the decoder ->
    # encoder layers: Conv2d(3->64, 3x3) ; ReLU+Conv2d(64->32, 4x4 s2) ; ReLU+Conv2d(32->16, 4x4 s2)
    B, in_ch, H, W = 2, 3, 16, 16
    up_layer_specs = [
        dict(type="upsample", in_channels=16, out_channels=32),
        dict(type="upsample", in_channels=32, out_channels=64),
    ]
    cfgs = build_encoder_layer_cfgs(in_ch, up_layer_specs)

    key = jax.random.PRNGKey(0)
    kx, key = jax.random.split(key)
    x = jax.random.normal(kx, (B, in_ch, H, W), dtype=jnp.float32)

    params = []
    for cfg in cfgs:
        kw_, kb_, key = jax.random.split(key, 3)
        params.append(dict(
            w=0.1 * jax.random.normal(kw_, (cfg["cout"], cfg["cin"], cfg["k"], cfg["k"]),
                                      dtype=jnp.float32),
            b=0.1 * jax.random.normal(kb_, (cfg["cout"],), dtype=jnp.float32),
        ))

    run = jax.jit(lambda xx, pp: encoder_forward(xx, cfgs, pp))
    out = jax.block_until_ready(run(x, params))

    ref = _encoder_reference(x, cfgs, params)
    expect_keys = {str((B, 64, 16, 16)), str((B, 32, 8, 8)), str((B, 16, 4, 4))}
    assert set(out.keys()) == expect_keys and set(ref.keys()) == expect_keys
    for kname in expect_keys:
        assert out[kname].shape == ref[kname].shape
        assert jnp.allclose(out[kname], ref[kname], atol=2e-2, rtol=2e-2), kname

    print("KERNEL_OK")
</pallas_src>

<mosaic_0001>
module attributes {stable_mosaic.version = 11 : i64} {
  func.func @_fused_relu_conv_mm_kernel(%arg0: i32, %arg1: i32, %arg2: memref<1x32x256xf32, #tpu.memory_space<vmem>>, %arg3: memref<64x32xf32, #tpu.memory_space<vmem>>, %arg4: memref<64x1xf32, #tpu.memory_space<vmem>>, %arg5: memref<1x64x256xf32, #tpu.memory_space<vmem>>) attributes {dimension_semantics = [#tpu.dimension_semantics<parallel>, #tpu.dimension_semantics<parallel>], iteration_bounds = array<i64: 2, 1>, scalar_prefetch = 0 : i64, scratch_operands = 0 : i64, tpu.core_type = #tpu.core_type<tc>, window_params = [{transform_indices = @transform_0, window_bounds = array<i64: 1, 32, 256>}, {pipeline_mode = #tpu.pipeline_mode<synchronous>, transform_indices = @transform_1, window_bounds = array<i64: 64, 32>}, {pipeline_mode = #tpu.pipeline_mode<synchronous>, transform_indices = @transform_2, window_bounds = array<i64: 64, 1>}, {transform_indices = @transform_3, window_bounds = array<i64: 1, 64, 256>}]} {
    %c0 = arith.constant 0 : index
    %c0_0 = arith.constant 0 : index
    %c0_1 = arith.constant 0 : index
    %0 = vector.load %arg2[%c0, %c0_0, %c0_1] : memref<1x32x256xf32, #tpu.memory_space<vmem>>, vector<1x32x256xf32>
    %1 = vector.shape_cast %0 : vector<1x32x256xf32> to vector<32x256xf32>
    %c0_2 = arith.constant 0 : index
    %c0_3 = arith.constant 0 : index
    %2 = vector.load %arg3[%c0_2, %c0_3] : memref<64x32xf32, #tpu.memory_space<vmem>>, vector<64x32xf32>
    %cst = arith.constant dense<0.000000e+00> : vector<64x256xf32>
    %3 = tpu.matmul %2, %1, %cst {dimension_numbers = #tpu.dot_dimension_numbers<[1], [0], [0], [1], [0, 0, 1, 1], [], []>} : vector<64x32xf32>, vector<32x256xf32>, vector<64x256xf32> -> vector<64x256xf32>
    %c0_4 = arith.constant 0 : index
    %c0_5 = arith.constant 0 : index
    %4 = vector.load %arg4[%c0_4, %c0_5] : memref<64x1xf32, #tpu.memory_space<vmem>>, vector<64x1xf32>
    %5 = vector.broadcast %4 : vector<64x1xf32> to vector<64x256xf32>
    %6 = arith.addf %3, %5 : vector<64x256xf32>
    %c0_6 = arith.constant 0 : index
    %c0_7 = arith.constant 0 : index
    %c0_8 = arith.constant 0 : index
    %7 = vector.load %arg5[%c0_6, %c0_7, %c0_8] : memref<1x64x256xf32, #tpu.memory_space<vmem>>, vector<1x64x256xf32>
    %8 = vector.shape_cast %7 : vector<1x64x256xf32> to vector<64x256xf32>
    %9 = vector.shape_cast %6 : vector<64x256xf32> to vector<1x64x256xf32>
    tpu.vector_store %arg5[%c0_6, %c0_7, %c0_8], %9 {strides = array<i32>} : memref<1x64x256xf32, #tpu.memory_space<vmem>>, vector<1x64x256xf32>,
    return
  }
  func.func @transform_0(%arg0: i32, %arg1: i32) -> (i32, i32, i32) {
    %c0_i32 = arith.constant 0 : i32
    %c0_i32_0 = arith.constant 0 : i32
    return %arg0, %c0_i32, %arg1 : i32, i32, i32
  }
  func.func @transform_1(%arg0: i32, %arg1: i32) -> (i32, i32) {
    %c0_i32 = arith.constant 0 : i32
    %c0_i32_0 = arith.constant 0 : i32
    %c0_i32_1 = arith.constant 0 : i32
    return %c0_i32, %c0_i32_0 : i32, i32
  }
  func.func @transform_2(%arg0: i32, %arg1: i32) -> (i32, i32) {
    %c0_i32 = arith.constant 0 : i32
    %c0_i32_0 = arith.constant 0 : i32
    %c0_i32_1 = arith.constant 0 : i32
    return %c0_i32, %c0_i32_0 : i32, i32
  }
  func.func @transform_3(%arg0: i32, %arg1: i32) -> (i32, i32, i32) {
    %c0_i32 = arith.constant 0 : i32
    %c0_i32_0 = arith.constant 0 : i32
    return %arg0, %c0_i32, %arg1 : i32, i32, i32
  }
}

module attributes {stable_mosaic.version = 11 : i64} {
  func.func @_fused_relu_conv_mm_kernel(%arg0: i32, %arg1: i32, %arg2: memref<1x1024x128xf32, #tpu.memory_space<vmem>>, %arg3: memref<32x1024xf32, #tpu.memory_space<vmem>>, %arg4: memref<32x1xf32, #tpu.memory_space<vmem>>, %arg5: memref<1x32x128xf32, #tpu.memory_space<vmem>>) attributes {dimension_semantics = [#tpu.dimension_semantics<parallel>, #tpu.dimension_semantics<parallel>], iteration_bounds = array<i64: 2, 1>, scalar_prefetch = 0 : i64, scratch_operands = 0 : i64, tpu.core_type = #tpu.core_type<tc>, window_params = [{transform_indices = @transform_0, window_bounds = array<i64: 1, 1024, 128>}, {pipeline_mode = #tpu.pipeline_mode<synchronous>, transform_indices = @transform_1, window_bounds = array<i64: 32, 1024>}, {pipeline_mode = #tpu.pipeline_mode<synchronous>, transform_indices = @transform_2, window_bounds = array<i64: 32, 1>}, {transform_indices = @transform_3, window_bounds = array<i64: 1, 32, 128>}]} {
    %c0 = arith.constant 0 : index
    %c0_0 = arith.constant 0 : index
    %c0_1 = arith.constant 0 : index
    %0 = vector.load %arg2[%c0, %c0_0, %c0_1] : memref<1x1024x128xf32, #tpu.memory_space<vmem>>, vector<1x1024x128xf32>
    %1 = vector.shape_cast %0 : vector<1x1024x128xf32> to vector<1024x128xf32>
    %cst = arith.constant 0.000000e+00 : f32
    %2 = vector.broadcast %cst : f32 to vector<1024x128xf32>
    %3 = arith.maximumf %1, %2 : vector<1024x128xf32>
    %c0_2 = arith.constant 0 : index
    %c0_3 = arith.constant 0 : index
    %4 = vector.load %arg3[%c0_2, %c0_3] : memref<32x1024xf32, #tpu.memory_space<vmem>>, vector<32x1024xf32>
    %cst_4 = arith.constant dense<0.000000e+00> : vector<32x128xf32>
    %5 = tpu.matmul %4, %3, %cst_4 {dimension_numbers = #tpu.dot_dimension_numbers<[1], [0], [0], [1], [0, 0, 1, 1], [], []>} : vector<32x1024xf32>, vector<1024x128xf32>, vector<32x128xf32> -> vector<32x128xf32>
    %c0_5 = arith.constant 0 : index
    %c0_6 = arith.constant 0 : index
    %6 = vector.load %arg4[%c0_5, %c0_6] : memref<32x1xf32, #tpu.memory_space<vmem>>, vector<32x1xf32>
    %7 = vector.broadcast %6 : vector<32x1xf32> to vector<32x128xf32>
    %8 = arith.addf %5, %7 : vector<32x128xf32>
    %c0_7 = arith.constant 0 : index
    %c0_8 = arith.constant 0 : index
    %c0_9 = arith.constant 0 : index
    %9 = vector.load %arg5[%c0_7, %c0_8, %c0_9] : memref<1x32x128xf32, #tpu.memory_space<vmem>>, vector<1x32x128xf32>
    %10 = vector.shape_cast %9 : vector<1x32x128xf32> to vector<32x128xf32>
    %11 = vector.shape_cast %8 : vector<32x128xf32> to vector<1x32x128xf32>
    tpu.vector_store %arg5[%c0_7, %c0_8, %c0_9], %11 {strides = array<i32>} : memref<1x32x128xf32, #tpu.memory_space<vmem>>, vector<1x32x128xf32>,
    return
  }
  func.func @transform_0(%arg0: i32, %arg1: i32) -> (i32, i32, i32) {
    %c0_i32 = arith.constant 0 : i32
    %c0_i32_0 = arith.constant 0 : i32
    return %arg0, %c0_i32, %arg1 : i32, i32, i32
  }
  func.func @transform_1(%arg0: i32, %arg1: i32) -> (i32, i32) {
    %c0_i32 = arith.constant 0 : i32
    %c0_i32_0 = arith.constant 0 : i32
    %c0_i32_1 = arith.constant 0 : i32
    return %c0_i32, %c0_i32_0 : i32, i32
  }
  func.func @transform_2(%arg0: i32, %arg1: i32) -> (i32, i32) {
    %c0_i32 = arith.constant 0 : i32
    %c0_i32_0 = arith.constant 0 : i32
    %c0_i32_1 = arith.constant 0 : i32
    return %c0_i32, %c0_i32_0 : i32, i32
  }
  func.func @transform_3(%arg0: i32, %arg1: i32) -> (i32, i32, i32) {
    %c0_i32 = arith.constant 0 : i32
    %c0_i32_0 = arith.constant 0 : i32
    return %arg0, %c0_i32, %arg1 : i32, i32, i32
  }
}

module attributes {stable_mosaic.version = 11 : i64} {
  func.func @_fused_relu_conv_mm_kernel(%arg0: i32, %arg1: i32, %arg2: memref<1x512x128xf32, #tpu.memory_space<vmem>>, %arg3: memref<16x512xf32, #tpu.memory_space<vmem>>, %arg4: memref<16x1xf32, #tpu.memory_space<vmem>>, %arg5: memref<1x16x128xf32, #tpu.memory_space<vmem>>) attributes {dimension_semantics = [#tpu.dimension_semantics<parallel>, #tpu.dimension_semantics<parallel>], iteration_bounds = array<i64: 2, 1>, scalar_prefetch = 0 : i64, scratch_operands = 0 : i64, tpu.core_type = #tpu.core_type<tc>, window_params = [{transform_indices = @transform_0, window_bounds = array<i64: 1, 512, 128>}, {pipeline_mode = #tpu.pipeline_mode<synchronous>, transform_indices = @transform_1, window_bounds = array<i64: 16, 512>}, {pipeline_mode = #tpu.pipeline_mode<synchronous>, transform_indices = @transform_2, window_bounds = array<i64: 16, 1>}, {transform_indices = @transform_3, window_bounds = array<i64: 1, 16, 128>}]} {
    %c0 = arith.constant 0 : index
    %c0_0 = arith.constant 0 : index
    %c0_1 = arith.constant 0 : index
    %0 = vector.load %arg2[%c0, %c0_0, %c0_1] : memref<1x512x128xf32, #tpu.memory_space<vmem>>, vector<1x512x128xf32>
    %1 = vector.shape_cast %0 : vector<1x512x128xf32> to vector<512x128xf32>
    %cst = arith.constant 0.000000e+00 : f32
    %2 = vector.broadcast %cst : f32 to vector<512x128xf32>
    %3 = arith.maximumf %1, %2 : vector<512x128xf32>
    %c0_2 = arith.constant 0 : index
    %c0_3 = arith.constant 0 : index
    %4 = vector.load %arg3[%c0_2, %c0_3] : memref<16x512xf32, #tpu.memory_space<vmem>>, vector<16x512xf32>
    %cst_4 = arith.constant dense<0.000000e+00> : vector<16x128xf32>
    %5 = tpu.matmul %4, %3, %cst_4 {dimension_numbers = #tpu.dot_dimension_numbers<[1], [0], [0], [1], [0, 0, 1, 1], [], []>} : vector<16x512xf32>, vector<512x128xf32>, vector<16x128xf32> -> vector<16x128xf32>
    %c0_5 = arith.constant 0 : index
    %c0_6 = arith.constant 0 : index
    %6 = vector.load %arg4[%c0_5, %c0_6] : memref<16x1xf32, #tpu.memory_space<vmem>>, vector<16x1xf32>
    %7 = vector.broadcast %6 : vector<16x1xf32> to vector<16x128xf32>
    %8 = arith.addf %5, %7 : vector<16x128xf32>
    %c0_7 = arith.constant 0 : index
    %c0_8 = arith.constant 0 : index
    %c0_9 = arith.constant 0 : index
    %9 = vector.load %arg5[%c0_7, %c0_8, %c0_9] : memref<1x16x128xf32, #tpu.memory_space<vmem>>, vector<1x16x128xf32>
    %10 = vector.shape_cast %9 : vector<1x16x128xf32> to vector<16x128xf32>
    %11 = vector.shape_cast %8 : vector<16x128xf32> to vector<1x16x128xf32>
    tpu.vector_store %arg5[%c0_7, %c0_8, %c0_9], %11 {strides = array<i32>} : memref<1x16x128xf32, #tpu.memory_space<vmem>>, vector<1x16x128xf32>,
    return
  }
  func.func @transform_0(%arg0: i32, %arg1: i32) -> (i32, i32, i32) {
    %c0_i32 = arith.constant 0 : i32
    %c0_i32_0 = arith.constant 0 : i32
    return %arg0, %c0_i32, %arg1 : i32, i32, i32
  }
  func.func @transform_1(%arg0: i32, %arg1: i32) -> (i32, i32) {
    %c0_i32 = arith.constant 0 : i32
    %c0_i32_0 = arith.constant 0 : i32
    %c0_i32_1 = arith.constant 0 : i32
    return %c0_i32, %c0_i32_0 : i32, i32
  }
  func.func @transform_2(%arg0: i32, %arg1: i32) -> (i32, i32) {
    %c0_i32 = arith.constant 0 : i32
    %c0_i32_0 = arith.constant 0 : i32
    %c0_i32_1 = arith.constant 0 : i32
    return %c0_i32, %c0_i32_0 : i32, i32
  }
  func.func @transform_3(%arg0: i32, %arg1: i32) -> (i32, i32, i32) {
    %c0_i32 = arith.constant 0 : i32
    %c0_i32_0 = arith.constant 0 : i32
    return %arg0, %c0_i32, %arg1 : i32, i32, i32
  }
}

</mosaic_0001>

<llo_original>
// kernel: _lambda_.3
$region0: #{_lambda_.3}
  #allocation0 [shape = 'u32[]', space=smem, size = 0x4, offset = 0x4, fixed_abs, tag = 'smem constant byte address 0x4 - core index']
  #allocation1 [shape = 'u32[144,128]{1,0:T(1,128)}', space=vmem, size = 0x12000, scoped, tag = 'internal scratch']
  %s0 = inlined_call_operand.vmem [shape: f32[2,32,256], index: 0, kind: input, shape index: {}]
  %s1 = inlined_call_operand.vmem [shape: f32[64,32], index: 1, kind: input, shape index: {}]
  %s2 = inlined_call_operand.vmem [shape: f32[64,1], index: 2, kind: input, shape index: {}]
  %s3 = inlined_call_operand.vmem [shape: f32[2,64,256], index: 3, kind: output, shape index: {}]
  %s4 = sld [smem:[#allocation0]]
  $region45: #{_lambda_.3} parent=0
    _
  %s6 = ssub.s32 1, %s4
  %s7 = scalar_select 0, %s6, %s4
  loop: start=0, step=1, limit=4
  $region2: #{_lambda_.3} parent=0 // loop_pre_header
    _
  $region3: #{_lambda_.3} parent=0 // loop_header
    %s9 = sphi 0, %s13
    %p10 = scmp.ge.s32.totalorder %s9, 4
    %s16 = sphi 0, %s28
    %s17 = sphi 0, %s24
    %s18 = sphi 0, %s16
    %s19 = sphi 0, %s17
    %s20 = sphi 0, %s18
    %s21 = sphi 0, %s19
    %s33 = sphi 0, %s35
    %s36 = sphi 0, %s33
    %s37 = sphi 0, %s36
    %s53 = sphi 0, %s37
    %s57 = sphi 0, %s57
    %s59 = sphi 0, %s57
    %s60 = sphi 0, %s59
    %s74 = sphi 0, %s60
    %s78 = sphi 0, %s78
    %s80 = sphi 0, %s78
    %s81 = sphi 0, %s80
    %s95 = sphi 0, %s81
    %s103 = sphi 0, %s105
    %s106 = sphi 0, %s103
    %s107 = sphi 0, %s106
    %s123 = sphi 0, %s107
  $region4: #{_lambda_.3} parent=0 // loop_header_branch
    %12 = sbr.rel (%p10) target = $region8
  $region5: #{_lambda_.3} parent=0 // loop_body
    %s14 = ssub.s32 %s9, 1
    %s15 = ssub.s32 %s9, 2
    %s22 = sadd.s32 1, %s17
    %p23 = scmp.ge.s32.totalorder %s22, 1
    %s24 = scalar_select %p23, 0, %s22
    %s25 = sadd.s32 1, %s16
    %s26 = scalar_select %p23, %s25, %s16
    %p27 = scmp.ge.s32.totalorder %s26, 2
    %s28 = scalar_select %p27, 0, %s26
    %s29 = ssub.s32 %s16, %s28
    %s30 = ssub.s32 %s17, %s24
    %s31 = sor.u32 %s29, %s30
    %p32 = scmp.eq.s32.totalorder %s31, 0
    %s34 = sadd.s32 %s33, 1
    %s35 = scalar_select %p32, %s33, %s34
    %p38 = pneg %p32
    %p39 = scmp.eq.s32.totalorder %s9, 1
    %p40 = por %p38, %p39
    %p41 = scmp.ne.s32.totalorder %s33, %s36
    %p42 = scmp.eq.s32.totalorder %s9, 0
    %p43 = por %p41, %p42
    %p44 = scmp.ne.s32.totalorder %s33, %s36
    %p45 = scmp.eq.s32.totalorder %s14, 1
    %p46 = por %p44, %p45
    %p47 = scmp.ne.s32.totalorder %s36, %s37
    %p48 = scmp.eq.s32.totalorder %s14, 0
    %p49 = por %p47, %p48
    %p50 = scmp.ne.s32.totalorder %s36, %s37
    %p51 = scmp.eq.s32.totalorder %s15, 1
    %p52 = por %p50, %p51
    %p54 = scmp.ne.s32.totalorder %s37, %s53
    %p55 = scmp.eq.s32.totalorder %s15, 0
    %p56 = por %p54, %p55
    %s58 = sadd.s32 %s57, 1
    %p61 = scmp.eq.s32.totalorder %s9, 1
    %p62 = scmp.ne.s32.totalorder %s57, %s59
    %p63 = scmp.eq.s32.totalorder %s9, 0
    %p64 = por %p62, %p63
    %p65 = scmp.ne.s32.totalorder %s57, %s59
    %p66 = scmp.eq.s32.totalorder %s14, 1
    %p67 = por %p65, %p66
    %p68 = scmp.ne.s32.totalorder %s59, %s60
    %p69 = scmp.eq.s32.totalorder %s14, 0
    %p70 = por %p68, %p69
    %p71 = scmp.ne.s32.totalorder %s59, %s60
    %p72 = scmp.eq.s32.totalorder %s15, 1
    %p73 = por %p71, %p72
    %p75 = scmp.ne.s32.totalorder %s60, %s74
    %p76 = scmp.eq.s32.totalorder %s15, 0
    %p77 = por %p75, %p76
    %s79 = sadd.s32 %s78, 1
    %p82 = scmp.eq.s32.totalorder %s9, 1
    %p83 = scmp.ne.s32.totalorder %s78, %s80
    %p84 = scmp.eq.s32.totalorder %s9, 0
    %p85 = por %p83, %p84
    %p86 = scmp.ne.s32.totalorder %s78, %s80
    %p87 = scmp.eq.s32.totalorder %s14, 1
    %p88 = por %p86, %p87
    %p89 = scmp.ne.s32.totalorder %s80, %s81
    %p90 = scmp.eq.s32.totalorder %s14, 0
    %p91 = por %p89, %p90
    %p92 = scmp.ne.s32.totalorder %s80, %s81
    %p93 = scmp.eq.s32.totalorder %s15, 1
    %p94 = por %p92, %p93
    %p96 = scmp.ne.s32.totalorder %s81, %s95
    %p97 = scmp.eq.s32.totalorder %s15, 0
    %p98 = por %p96, %p97
    %s99 = ssub.s32 %s16, %s28
    %s100 = ssub.s32 %s17, %s24
    %s101 = sor.u32 %s99, %s100
    %p102 = scmp.eq.s32.totalorder %s101, 0
    %s104 = sadd.s32 %s103, 1
    %s105 = scalar_select %p102, %s103, %s104
    %p108 = pneg %p102
    %p109 = scmp.eq.s32.totalorder %s9, 1
    %p110 = por %p108, %p109
    %p111 = scmp.ne.s32.totalorder %s103, %s106
    %p112 = scmp.eq.s32.totalorder %s9, 0
    %p113 = por %p111, %p112
    %p114 = scmp.ne.s32.totalorder %s103, %s106
    %p115 = scmp.eq.s32.totalorder %s14, 1
    %p116 = por %p114, %p115
    %p117 = scmp.ne.s32.totalorder %s106, %s107
    %p118 = scmp.eq.s32.totalorder %s14, 0
    %p119 = por %p117, %p118
    %p120 = scmp.ne.s32.totalorder %s106, %s107
    %p121 = scmp.eq.s32.totalorder %s15, 1
    %p122 = por %p120, %p121
    %p124 = scmp.ne.s32.totalorder %s107, %s123
    %p125 = scmp.eq.s32.totalorder %s15, 0
    %p126 = por %p124, %p125
    %p127 = scmp.le.s32.totalorder 1, %s9
    %p128 = scmp.lt.s32.totalorder %s9, 3
    %p129 = pnand %p127, %p128
    %p130 = pneg %p129
    // Predicated region
    $region9: #{_lambda_.3} parent=5 // pred_check
      _
    $region10: #{_lambda_.3} parent=5 // pred_check_branch
      %132 = sbr.rel (%p129) target = $region12
    $region11: #{_lambda_.3} parent=5 // pred_region
      %s133 = ssub.s32 %s9, 1
      // Predicated region
      $region13: #{_lambda_.3} parent=11 // pred_check
        %p134 = pneg %p70
      $region14: #{_lambda_.3} parent=11 // pred_check_branch
        %136 = sbr.rel (%p134) target = $region16
      $region15: #{_lambda_.3} parent=11 // pred_region
        _
      $region16: #{_lambda_.3} parent=11 // pred_fallthru
        _
      // Predicated region
      $region17: #{_lambda_.3} parent=11 // pred_check
        %p137 = pneg %p91
      $region18: #{_lambda_.3} parent=11 // pred_check_branch
        %139 = sbr.rel (%p137) target = $region20
      $region19: #{_lambda_.3} parent=11 // pred_region
        _
      $region20: #{_lambda_.3} parent=11 // pred_fallthru
        _
    $region12: #{_lambda_.3} parent=5 // pred_fallthru
      _
    %p140 = scmp.lt.s32.totalorder %s9, 2
    // Predicated region
    $region21: #{_lambda_.3} parent=5 // pred_check
      %p141 = pneg %p140
    $region22: #{_lambda_.3} parent=5 // pred_check_branch
      %143 = sbr.rel (%p141) target = $region24
    $region23: #{_lambda_.3} parent=5 // pred_region
      // Predicated region
      $region25: #{_lambda_.3} parent=23 // pred_check
        %p144 = pneg %p43
      $region26: #{_lambda_.3} parent=23 // pred_check_branch
        %146 = sbr.rel (%p144) target = $region28
      $region27: #{_lambda_.3} parent=23 // pred_region
        %s147 = smul.u32 2, %s17
        %p148 = scmp.lt.s32.totalorder %s16, 1
        %s149 = scalar_select %p148, %s16, 1
        %p150 = scmp.lt.s32.totalorder %s147, 1
        %s151 = scalar_select %p150, %s147, 1
        %s152 = smul.addr %s149, 8
        %s153 = sadd.s32 %s151, %s152
        %s154 = smul.addr %s153, 8
        %s155 = scalar_lea.vmem %s0, %s154
        %s156 = smul.u32 2, %s17
      $region28: #{_lambda_.3} parent=23 // pred_fallthru
        _
    $region24: #{_lambda_.3} parent=5 // pred_fallthru
      _
    %p157 = scmp.le.s32.totalorder 1, %s9
    %p158 = scmp.lt.s32.totalorder %s9, 3
    %p159 = pnand %p157, %p158
    %p160 = pneg %p159
    // Predicated region
    $region29: #{_lambda_.3} parent=5 // pred_check
      _
    $region30: #{_lambda_.3} parent=5 // pred_check_branch
      %162 = sbr.rel (%p159) target = $region32
    $region31: #{_lambda_.3} parent=5 // pred_region
      %s163 = ssub.s32 %s9, 1
      %s164 = smul.u32 2, %s19
      %p165 = scmp.lt.s32.totalorder %s18, 1
      %s166 = scalar_select %p165, %s18, 1
      %p167 = scmp.lt.s32.totalorder %s164, 1
      %s168 = scalar_select %p167, %s164, 1
      %s169 = smul.addr %s166, 8
      %s170 = sadd.s32 %s168, %s169
      %s171 = smul.addr %s170, 8
      %s172 = scalar_lea.vmem %s0, %s171
      %p173 = pneg %p49
      %p174 = pneg %p46
      %p175 = pneg %p70
      %p176 = pneg %p67
      %p177 = pneg %p91
      %p178 = pneg %p88
      %p179 = pneg %p119
      %p180 = pneg %p116
      %s181 = smul.u32 2, %s19
      %p182 = scmp.lt.s32.totalorder %s18, 1
      %s183 = scalar_select %p182, %s18, 1
      %p184 = scmp.lt.s32.totalorder %s181, 1
      %s185 = scalar_select %p184, %s181, 1
      %s186 = smul.addr %s183, 16
      %s187 = sadd.s32 %s185, %s186
      %s188 = smul.addr %s187, 8
      %s189 = scalar_lea.vmem %s3, %s188
      %s190 = smul.u32 2, %s19
      %p191 = scmp.lt.s32.totalorder %s18, 1
      %s192 = scalar_select %p191, %s18, 1
      %p193 = scmp.lt.s32.totalorder %s190, 1
      %s194 = scalar_select %p193, %s190, 1
      %s195 = smul.addr %s192, 8
      %s196 = sadd.s32 %s194, %s195
      %s197 = smul.addr %s196, 8
      %s198 = scalar_lea.vmem %s0, %s197
      %s199 = smul.u32 2, %s19
      %s200 = smul.u32 2, %s19
      %p201 = scmp.lt.s32.totalorder %s18, 1
      %s202 = scalar_select %p201, %s18, 1
      %p203 = scmp.lt.s32.totalorder %s200, 1
      %s204 = scalar_select %p203, %s200, 1
      %s205 = smul.addr %s202, 16
      %s206 = sadd.s32 %s204, %s205
      %s207 = smul.addr %s206, 8
      %s208 = scalar_lea.vmem %s3, %s207
      %s209 = smul.u32 2, %s19
      %v210 = vld [vmem:[%s198] sm:$0xff]
      %v211 = vld [vmem:[%s198 + $0x8] sm:$0xff]
      %v212 = vld [vmem:[%s198 + $0x10] sm:$0xff]
      %v213 = vld [vmem:[%s198 + $0x18] sm:$0xff]
      %v214 = vld [vmem:[%s198 + $0x20] sm:$0xff]
      %v215 = vld [vmem:[%s198 + $0x28] sm:$0xff]
      %v216 = vld [vmem:[%s198 + $0x30] sm:$0xff]
      %v217 = vld [vmem:[%s198 + $0x38] sm:$0xff]
      %v218 = vld [vmem:[%s1] sm:$0xff]
      %v219 = vld [vmem:[%s1 + $0x8] sm:$0xff]
      %v220 = vld [vmem:[%s1 + $0x10] sm:$0xff]
      %v221 = vld [vmem:[%s1 + $0x18] sm:$0xff]
      %v222 = vld [vmem:[%s1 + $0x20] sm:$0xff]
      %v223 = vld [vmem:[%s1 + $0x28] sm:$0xff]
      %v224 = vld [vmem:[%s1 + $0x30] sm:$0xff]
      %v225 = vld [vmem:[%s1 + $0x38] sm:$0xff]
      %v226 = vld [vmem:[%s2] sm:$0xff]
      %v227 = vld [vmem:[%s2 + $0x8] sm:$0xff]
      %v228 = vld [vmem:[%s2 + $0x10] sm:$0xff]
      %v229 = vld [vmem:[%s2 + $0x18] sm:$0xff]
      %v230 = vld [vmem:[%s2 + $0x20] sm:$0xff]
      %v231 = vld [vmem:[%s2 + $0x28] sm:$0xff]
      %v232 = vld [vmem:[%s2 + $0x30] sm:$0xff]
      %v233 = vld [vmem:[%s2 + $0x38] sm:$0xff]
      %235 = vset.pattern.permute.xlu0 0
      %236 = vperm.xlu0 %235, %v226
      %v237 = vpop.permute.xlu0 %236
      %240 = vset.pattern.permute.xlu0 0
      %241 = vperm.xlu0 %240, %v227
      %v242 = vpop.permute.xlu0 %241
      %245 = vset.pattern.permute.xlu0 0
      %246 = vperm.xlu0 %245, %v228
      %v247 = vpop.permute.xlu0 %246
      %250 = vset.pattern.permute.xlu0 0
      %251 = vperm.xlu0 %250, %v229
      %v252 = vpop.permute.xlu0 %251
      %255 = vset.pattern.permute.xlu0 0
      %256 = vperm.xlu0 %255, %v230
      %v257 = vpop.permute.xlu0 %256
      %260 = vset.pattern.permute.xlu0 0
      %261 = vperm.xlu0 %260, %v231
      %v262 = vpop.permute.xlu0 %261
      %265 = vset.pattern.permute.xlu0 0
      %266 = vperm.xlu0 %265, %v232
      %v267 = vpop.permute.xlu0 %266
      %270 = vset.pattern.permute.xlu0 0
      %271 = vperm.xlu0 %270, %v233
      %v272 = vpop.permute.xlu0 %271
      %vm274 = vcmask 261120
      %v276 = vsel %vm274, %v218, 0
      %v279 = vsel %vm274, %v219, 0
      %v282 = vsel %vm274, %v220, 0
      %v285 = vsel %vm274, %v221, 0
      %v288 = vsel %vm274, %v222, 0
      %v291 = vsel %vm274, %v223, 0
      %v294 = vsel %vm274, %v224, 0
      %v297 = vsel %vm274, %v225, 0
      %299 = vmatprep.subr.mxu0 0.0
      %300 = vmatpush1.msra.mxu0 0.0
      %301 = vmatprep.subr.mxu0 0.0
      %302 = vmatpush1.msra.mxu0 0.0
      %303 = vmatprep.subr.mxu0 0.0
      %304 = vmatpush1.msra.mxu0 0.0
      %305 = vmatprep.subr.mxu0 0.0
      %306 = vmatpush1.msra.mxu0 0.0
      %307 = vmatprep.subr.mxu0 0.0
      %308 = vmatpush1.msra.mxu0 0.0
      %309 = vmatprep.subr.mxu0 0.0
      %310 = vmatpush1.msra.mxu0 0.0
      %311 = vmatprep.subr.mxu0 0.0
      %312 = vmatpush1.msra.mxu0 0.0
      %313 = vmatprep.subr.mxu0 0.0
      %314 = vmatpush1.msra.mxu0 0.0
      %315 = vmatprep.subr.mxu0 0.0
      %316 = vmatpush1.msra.mxu0 0.0
      %317 = vmatprep.subr.mxu0 0.0
      %318 = vmatpush1.msra.mxu0 0.0
      %319 = vmatprep.subr.mxu0 0.0
      %320 = vmatpush1.msra.mxu0 0.0
      %321 = vmatprep.subr.mxu0 0.0
      %322 = vmatpush1.msra.mxu0 0.0
      %323 = vmatprep.subr.mxu0 %v217
      %324 = vmatpush1.msra.mxu0 %v216
      %325 = vmatprep.subr.mxu0 %v215
      %326 = vmatpush1.msra.mxu0 %v214
      %327 = vmatprep.subr.mxu0 %v213
      %328 = vmatpush1.msra.mxu0 %v212
      %329 = vmatprep.subr.mxu0 %v211
      %330 = vmatpush1.msra.mxu0 %v210
      %331 = vmatprep.subr.mxu0 0.0
      %332 = vmatpush2.msra.mxu0 0.0
      %333 = vmatprep.subr.mxu0 0.0
      %334 = vmatpush2.msra.mxu0 0.0
      %335 = vmatprep.subr.mxu0 0.0
      %336 = vmatpush2.msra.mxu0 0.0
      %337 = vmatprep.subr.mxu0 0.0
      %338 = vmatpush2.msra.mxu0 0.0
      %339 = vmatprep.subr.mxu0 0.0
      %340 = vmatpush2.msra.mxu0 0.0
      %341 = vmatprep.subr.mxu0 0.0
      %342 = vmatpush2.msra.mxu0 0.0
      %343 = vmatprep.subr.mxu0 0.0
      %344 = vmatpush2.msra.mxu0 0.0
      %345 = vmatprep.subr.mxu0 0.0
      %346 = vmatpush2.msra.mxu0 0.0
      %347 = vmatprep.subr.mxu0 0.0
      %348 = vmatpush2.msra.mxu0 0.0
      %349 = vmatprep.subr.mxu0 0.0
      %350 = vmatpush2.msra.mxu0 0.0
      %351 = vmatprep.subr.mxu0 0.0
      %352 = vmatpush2.msra.mxu0 0.0
      %353 = vmatprep.subr.mxu0 0.0
      %354 = vmatpush2.msra.mxu0 0.0
      %355 = vmatprep.subr.mxu0 0.0
      %356 = vmatpush2.msra.mxu0 0.0
      %357 = vmatprep.subr.mxu0 0.0
      %358 = vmatpush2.msra.mxu0 0.0
      %359 = vmatprep.subr.mxu0 0.0
      %360 = vmatpush2.msra.mxu0 0.0
      %361 = vmatprep.subr.mxu0 0.0
      %362 = vmatpush2.msra.mxu0 0.0
      %363 = vmatprep.mubr.f32.mxu0 0.0
      %364 = vmatmul.mubr.f32.gmra.mxu0 %v276
      %v365 = vpop.f32.mrf.mxu0
      %v366 = vadd.f32 %v237, %v365
      %v367 = vpop.f32.mrf.mxu0
      %v368 = vadd.f32 %v237, %v367
      %369 = vmatprep.mubr.f32.mxu0 0.0
      %370 = vmatmul.mubr.f32.gmra.mxu0 %v279
      %v371 = vpop.f32.mrf.mxu0
      %v372 = vadd.f32 %v242, %v371
      %v373 = vpop.f32.mrf.mxu0
      %v374 = vadd.f32 %v242, %v373
      %375 = vmatprep.mubr.f32.mxu0 0.0
      %376 = vmatmul.mubr.f32.gmra.mxu0 %v282
      %v377 = vpop.f32.mrf.mxu0
      %v378 = vadd.f32 %v247, %v377
      %v379 = vpop.f32.mrf.mxu0
      %v380 = vadd.f32 %v247, %v379
      %381 = vmatprep.mubr.f32.mxu0 0.0
      %382 = vmatmul.mubr.f32.gmra.mxu0 %v285
      %v383 = vpop.f32.mrf.mxu0
      %v384 = vadd.f32 %v252, %v383
      %v385 = vpop.f32.mrf.mxu0
      %v386 = vadd.f32 %v252, %v385
      %387 = vmatprep.mubr.f32.mxu0 0.0
      %388 = vmatmul.mubr.f32.gmra.mxu0 %v288
      %v389 = vpop.f32.mrf.mxu0
      %v390 = vadd.f32 %v257, %v389
      %v391 = vpop.f32.mrf.mxu0
      %v392 = vadd.f32 %v257, %v391
      %393 = vmatprep.mubr.f32.mxu0 0.0
      %394 = vmatmul.mubr.f32.gmra.mxu0 %v291
      %v395 = vpop.f32.mrf.mxu0
      %v396 = vadd.f32 %v262, %v395
      %v397 = vpop.f32.mrf.mxu0
      %v398 = vadd.f32 %v262, %v397
      %399 = vmatprep.mubr.f32.mxu0 0.0
      %400 = vmatmul.mubr.f32.gmra.mxu0 %v294
      %v401 = vpop.f32.mrf.mxu0
      %v402 = vadd.f32 %v267, %v401
      %v403 = vpop.f32.mrf.mxu0
      %v404 = vadd.f32 %v267, %v403
      %405 = vmatprep.mubr.f32.mxu0 0.0
      %406 = vmatmul.mubr.f32.gmra.mxu0 %v297
      %v407 = vpop.f32.mrf.mxu0
      %v408 = vadd.f32 %v272, %v407
      %v409 = vpop.f32.mrf.mxu0
      %v410 = vadd.f32 %v272, %v409
      %411 = vdwg.mxu0
      %412 = vst [vmem:[%s208] sm:$0xff] %v366
      %413 = vst [vmem:[%s208 + $0x8] sm:$0xff] %v368
      %414 = vst [vmem:[%s208 + $0x10] sm:$0xff] %v372
      %415 = vst [vmem:[%s208 + $0x18] sm:$0xff] %v374
      %416 = vst [vmem:[%s208 + $0x20] sm:$0xff] %v378
      %417 = vst [vmem:[%s208 + $0x28] sm:$0xff] %v380
      %418 = vst [vmem:[%s208 + $0x30] sm:$0xff] %v384
      %419 = vst [vmem:[%s208 + $0x38] sm:$0xff] %v386
      %420 = vst [vmem:[%s208 + $0x40] sm:$0xff] %v390
      %421 = vst [vmem:[%s208 + $0x48] sm:$0xff] %v392
      %422 = vst [vmem:[%s208 + $0x50] sm:$0xff] %v396
      %423 = vst [vmem:[%s208 + $0x58] sm:$0xff] %v398
      %424 = vst [vmem:[%s208 + $0x60] sm:$0xff] %v402
      %425 = vst [vmem:[%s208 + $0x68] sm:$0xff] %v404
      %426 = vst [vmem:[%s208 + $0x70] sm:$0xff] %v408
      %427 = vst [vmem:[%s208 + $0x78] sm:$0xff] %v410
      %s428 = smul.u32 2, %s19
      %p429 = scmp.lt.s32.totalorder %s18, 1
      %s430 = scalar_select %p429, %s18, 1
      %p431 = scmp.lt.s32.totalorder %s428, 1
      %s432 = scalar_select %p431, %s428, 1
      %s433 = smul.addr %s430, 16
      %s434 = sadd.s32 %s432, %s433
      %s435 = smul.addr %s434, 8
      %s436 = scalar_lea.vmem %s3, %s435
      // Predicated region
      $region33: #{_lambda_.3} parent=31 // pred_check
        %p437 = pneg %p116
      $region34: #{_lambda_.3} parent=31 // pred_check_branch
        %439 = sbr.rel (%p437) target = $region36
      $region35: #{_lambda_.3} parent=31 // pred_region
        %s440 = smul.u32 2, %s19
      $region36: #{_lambda_.3} parent=31 // pred_fallthru
        _
    $region32: #{_lambda_.3} parent=5 // pred_fallthru
      _
    %p441 = scmp.le.s32.totalorder 2, %s9
    // Predicated region
    $region37: #{_lambda_.3} parent=5 // pred_check
      %p442 = pneg %p441
    $region38: #{_lambda_.3} parent=5 // pred_check_branch
      %444 = sbr.rel (%p442) target = $region40
    $region39: #{_lambda_.3} parent=5 // pred_region
      %s445 = ssub.s32 %s9, 2
      // Predicated region
      $region41: #{_lambda_.3} parent=39 // pred_check
        %p446 = pneg %p122
      $region42: #{_lambda_.3} parent=39 // pred_check_branch
        %448 = sbr.rel (%p446) target = $region44
      $region43: #{_lambda_.3} parent=39 // pred_region
        %s449 = smul.u32 2, %s21
        %p450 = scmp.lt.s32.totalorder %s20, 1
        %s451 = scalar_select %p450, %s20, 1
        %p452 = scmp.lt.s32.totalorder %s449, 1
        %s453 = scalar_select %p452, %s449, 1
        %s454 = smul.addr %s451, 16
        %s455 = sadd.s32 %s453, %s454
        %s456 = smul.addr %s455, 8
        %s457 = scalar_lea.vmem %s3, %s456
      $region44: #{_lambda_.3} parent=39 // pred_fallthru
        _
    $region40: #{_lambda_.3} parent=5 // pred_fallthru
      _
  $region6: #{_lambda_.3} parent=0 // loop_footer
    %s13 = sadd.s32 1, %s9
  $region7: #{_lambda_.3} parent=0 // loop_footer_branch
    %8 = sbr.rel target = $region3
  $region8: #{_lambda_.3} parent=0 // loop_exit
    _

// kernel: _lambda_.4
$region0: #{_lambda_.4}
  #allocation0 [shape = 'u32[]', space=smem, size = 0x4, offset = 0x4, fixed_abs, tag = 'smem constant byte address 0x4 - core index']
  #allocation1 [shape = 'u32[144,128]{1,0:T(1,128)}', space=vmem, size = 0x12000, scoped, tag = 'internal scratch']
  %s0 = inlined_call_operand.vmem [shape: f32[2,1024,128], index: 0, kind: input, shape index: {}]
  %s1 = inlined_call_operand.vmem [shape: f32[32,1024], index: 1, kind: input, shape index: {}]
  %s2 = inlined_call_operand.vmem [shape: f32[32,1], index: 2, kind: input, shape index: {}]
  %s3 = inlined_call_operand.vmem [shape: f32[2,32,128], index: 3, kind: output, shape index: {}]
  %s4 = sld [smem:[#allocation0]]
  $region45: #{_lambda_.4} parent=0
    _
  %s6 = ssub.s32 1, %s4
  %s7 = scalar_select 0, %s6, %s4
  loop: start=0, step=1, limit=4
  $region2: #{_lambda_.4} parent=0 // loop_pre_header
    _
  $region3: #{_lambda_.4} parent=0 // loop_header
    %s9 = sphi 0, %s13
    %p10 = scmp.ge.s32.totalorder %s9, 4
    %s16 = sphi 0, %s28
    %s17 = sphi 0, %s24
    %s18 = sphi 0, %s16
    %s19 = sphi 0, %s17
    %s20 = sphi 0, %s18
    %s21 = sphi 0, %s19
    %s33 = sphi 0, %s35
    %s36 = sphi 0, %s33
    %s37 = sphi 0, %s36
    %s53 = sphi 0, %s37
    %s57 = sphi 0, %s57
    %s59 = sphi 0, %s57
    %s60 = sphi 0, %s59
    %s74 = sphi 0, %s60
    %s78 = sphi 0, %s78
    %s80 = sphi 0, %s78
    %s81 = sphi 0, %s80
    %s95 = sphi 0, %s81
    %s103 = sphi 0, %s105
    %s106 = sphi 0, %s103
    %s107 = sphi 0, %s106
    %s123 = sphi 0, %s107
  $region4: #{_lambda_.4} parent=0 // loop_header_branch
    %12 = sbr.rel (%p10) target = $region8
  $region5: #{_lambda_.4} parent=0 // loop_body
    %s14 = ssub.s32 %s9, 1
    %s15 = ssub.s32 %s9, 2
    %s22 = sadd.s32 1, %s17
    %p23 = scmp.ge.s32.totalorder %s22, 1
    %s24 = scalar_select %p23, 0, %s22
    %s25 = sadd.s32 1, %s16
    %s26 = scalar_select %p23, %s25, %s16
    %p27 = scmp.ge.s32.totalorder %s26, 2
    %s28 = scalar_select %p27, 0, %s26
    %s29 = ssub.s32 %s16, %s28
    %s30 = ssub.s32 %s17, %s24
    %s31 = sor.u32 %s29, %s30
    %p32 = scmp.eq.s32.totalorder %s31, 0
    %s34 = sadd.s32 %s33, 1
    %s35 = scalar_select %p32, %s33, %s34
    %p38 = pneg %p32
    %p39 = scmp.eq.s32.totalorder %s9, 1
    %p40 = por %p38, %p39
    %p41 = scmp.ne.s32.totalorder %s33, %s36
    %p42 = scmp.eq.s32.totalorder %s9, 0
    %p43 = por %p41, %p42
    %p44 = scmp.ne.s32.totalorder %s33, %s36
    %p45 = scmp.eq.s32.totalorder %s14, 1
    %p46 = por %p44, %p45
    %p47 = scmp.ne.s32.totalorder %s36, %s37
    %p48 = scmp.eq.s32.totalorder %s14, 0
    %p49 = por %p47, %p48
    %p50 = scmp.ne.s32.totalorder %s36, %s37
    %p51 = scmp.eq.s32.totalorder %s15, 1
    %p52 = por %p50, %p51
    %p54 = scmp.ne.s32.totalorder %s37, %s53
    %p55 = scmp.eq.s32.totalorder %s15, 0
    %p56 = por %p54, %p55
    %s58 = sadd.s32 %s57, 1
    %p61 = scmp.eq.s32.totalorder %s9, 1
    %p62 = scmp.ne.s32.totalorder %s57, %s59
    %p63 = scmp.eq.s32.totalorder %s9, 0
    %p64 = por %p62, %p63
    %p65 = scmp.ne.s32.totalorder %s57, %s59
    %p66 = scmp.eq.s32.totalorder %s14, 1
    %p67 = por %p65, %p66
    %p68 = scmp.ne.s32.totalorder %s59, %s60
    %p69 = scmp.eq.s32.totalorder %s14, 0
    %p70 = por %p68, %p69
    %p71 = scmp.ne.s32.totalorder %s59, %s60
    %p72 = scmp.eq.s32.totalorder %s15, 1
    %p73 = por %p71, %p72
    %p75 = scmp.ne.s32.totalorder %s60, %s74
    %p76 = scmp.eq.s32.totalorder %s15, 0
    %p77 = por %p75, %p76
    %s79 = sadd.s32 %s78, 1
    %p82 = scmp.eq.s32.totalorder %s9, 1
    %p83 = scmp.ne.s32.totalorder %s78, %s80
    %p84 = scmp.eq.s32.totalorder %s9, 0
    %p85 = por %p83, %p84
    %p86 = scmp.ne.s32.totalorder %s78, %s80
    %p87 = scmp.eq.s32.totalorder %s14, 1
    %p88 = por %p86, %p87
    %p89 = scmp.ne.s32.totalorder %s80, %s81
    %p90 = scmp.eq.s32.totalorder %s14, 0
    %p91 = por %p89, %p90
    %p92 = scmp.ne.s32.totalorder %s80, %s81
    %p93 = scmp.eq.s32.totalorder %s15, 1
    %p94 = por %p92, %p93
    %p96 = scmp.ne.s32.totalorder %s81, %s95
    %p97 = scmp.eq.s32.totalorder %s15, 0
    %p98 = por %p96, %p97
    %s99 = ssub.s32 %s16, %s28
    %s100 = ssub.s32 %s17, %s24
    %s101 = sor.u32 %s99, %s100
    %p102 = scmp.eq.s32.totalorder %s101, 0
    %s104 = sadd.s32 %s103, 1
    %s105 = scalar_select %p102, %s103, %s104
    %p108 = pneg %p102
    %p109 = scmp.eq.s32.totalorder %s9, 1
    %p110 = por %p108, %p109
    %p111 = scmp.ne.s32.totalorder %s103, %s106
    %p112 = scmp.eq.s32.totalorder %s9, 0
    %p113 = por %p111, %p112
    %p114 = scmp.ne.s32.totalorder %s103, %s106
    %p115 = scmp.eq.s32.totalorder %s14, 1
    %p116 = por %p114, %p115
    %p117 = scmp.ne.s32.totalorder %s106, %s107
    %p118 = scmp.eq.s32.totalorder %s14, 0
    %p119 = por %p117, %p118
    %p120 = scmp.ne.s32.totalorder %s106, %s107
    %p121 = scmp.eq.s32.totalorder %s15, 1
    %p122 = por %p120, %p121
    %p124 = scmp.ne.s32.totalorder %s107, %s123
    %p125 = scmp.eq.s32.totalorder %s15, 0
    %p126 = por %p124, %p125
    %p127 = scmp.le.s32.totalorder 1, %s9
    %p128 = scmp.lt.s32.totalorder %s9, 3
    %p129 = pnand %p127, %p128
    %p130 = pneg %p129
    // Predicated region
    $region9: #{_lambda_.4} parent=5 // pred_check
      _
    $region10: #{_lambda_.4} parent=5 // pred_check_branch
      %132 = sbr.rel (%p129) target = $region12
    $region11: #{_lambda_.4} parent=5 // pred_region
      %s133 = ssub.s32 %s9, 1
      // Predicated region
      $region13: #{_lambda_.4} parent=11 // pred_check
        %p134 = pneg %p70
      $region14: #{_lambda_.4} parent=11 // pred_check_branch
        %136 = sbr.rel (%p134) target = $region16
      $region15: #{_lambda_.4} parent=11 // pred_region
        _
      $region16: #{_lambda_.4} parent=11 // pred_fallthru
        _
      // Predicated region
      $region17: #{_lambda_.4} parent=11 // pred_check
        %p137 = pneg %p91
      $region18: #{_lambda_.4} parent=11 // pred_check_branch
        %139 = sbr.rel (%p137) target = $region20
      $region19: #{_lambda_.4} parent=11 // pred_region
        _
      $region20: #{_lambda_.4} parent=11 // pred_fallthru
        _
    $region12: #{_lambda_.4} parent=5 // pred_fallthru
      _
    %p140 = scmp.lt.s32.totalorder %s9, 2
    // Predicated region
    $region21: #{_lambda_.4} parent=5 // pred_check
      %p141 = pneg %p140
    $region22: #{_lambda_.4} parent=5 // pred_check_branch
      %143 = sbr.rel (%p141) target = $region24
    $region23: #{_lambda_.4} parent=5 // pred_region
      // Predicated region
      $region25: #{_lambda_.4} parent=23 // pred_check
        %p144 = pneg %p43
      $region26: #{_lambda_.4} parent=23 // pred_check_branch
        %146 = sbr.rel (%p144) target = $region28
      $region27: #{_lambda_.4} parent=23 // pred_region
        %p147 = scmp.lt.s32.totalorder %s16, 1
        %s148 = scalar_select %p147, %s16, 1
        %p149 = scmp.lt.s32.totalorder %s17, 0
        %s150 = scalar_select %p149, %s17, 0
        %s151 = smul.addr %s148, 128
        %s152 = sadd.s32 %s150, %s151
        %s153 = smul.addr %s152, 8
        %s154 = scalar_lea.vmem %s0, %s153
      $region28: #{_lambda_.4} parent=23 // pred_fallthru
        _
    $region24: #{_lambda_.4} parent=5 // pred_fallthru
      _
    %p155 = scmp.le.s32.totalorder 1, %s9
    %p156 = scmp.lt.s32.totalorder %s9, 3
    %p157 = pnand %p155, %p156
    %p158 = pneg %p157
    // Predicated region
    $region29: #{_lambda_.4} parent=5 // pred_check
      _
    $region30: #{_lambda_.4} parent=5 // pred_check_branch
      %160 = sbr.rel (%p157) target = $region32
    $region31: #{_lambda_.4} parent=5 // pred_region
      %s161 = ssub.s32 %s9, 1
      %p162 = scmp.lt.s32.totalorder %s18, 1
      %s163 = scalar_select %p162, %s18, 1
      %p164 = scmp.lt.s32.totalorder %s19, 0
      %s165 = scalar_select %p164, %s19, 0
      %s166 = smul.addr %s163, 128
      %s167 = sadd.s32 %s165, %s166
      %s168 = smul.addr %s167, 8
      %s169 = scalar_lea.vmem %s0, %s168
      %p170 = pneg %p49
      %p171 = pneg %p46
      %p172 = pneg %p70
      %p173 = pneg %p67
      %p174 = pneg %p91
      %p175 = pneg %p88
      %p176 = pneg %p119
      %p177 = pneg %p116
      %p178 = scmp.lt.s32.totalorder %s18, 1
      %s179 = scalar_select %p178, %s18, 1
      %p180 = scmp.lt.s32.totalorder %s19, 0
      %s181 = scalar_select %p180, %s19, 0
      %s182 = smul.addr %s179, 4
      %s183 = sadd.s32 %s181, %s182
      %s184 = smul.addr %s183, 8
      %s185 = scalar_lea.vmem %s3, %s184
      %p186 = scmp.lt.s32.totalorder %s18, 1
      %s187 = scalar_select %p186, %s18, 1
      %p188 = scmp.lt.s32.totalorder %s19, 0
      %s189 = scalar_select %p188, %s19, 0
      %s190 = smul.addr %s187, 128
      %s191 = sadd.s32 %s189, %s190
      %s192 = smul.addr %s191, 8
      %s193 = scalar_lea.vmem %s0, %s192
      %p194 = scmp.lt.s32.totalorder %s18, 1
      %s195 = scalar_select %p194, %s18, 1
      %p196 = scmp.lt.s32.totalorder %s19, 0
      %s197 = scalar_select %p196, %s19, 0
      %s198 = smul.addr %s195, 4
      %s199 = sadd.s32 %s197, %s198
      %s200 = smul.addr %s199, 8
      %s201 = scalar_lea.vmem %s3, %s200
      %v202 = vld [vmem:[%s193] sm:$0xff]
      %v203 = vld [vmem:[%s193 + $0x8] sm:$0xff]
      %v204 = vld [vmem:[%s193 + $0x10] sm:$0xff]
      %v205 = vld [vmem:[%s193 + $0x18] sm:$0xff]
      %v206 = vld [vmem:[%s193 + $0x20] sm:$0xff]
      %v207 = vld [vmem:[%s193 + $0x28] sm:$0xff]
      %v208 = vld [vmem:[%s193 + $0x30] sm:$0xff]
      %v209 = vld [vmem:[%s193 + $0x38] sm:$0xff]
      %v210 = vld [vmem:[%s193 + $0x40] sm:$0xff]
      %v211 = vld [vmem:[%s193 + $0x48] sm:$0xff]
      %v212 = vld [vmem:[%s193 + $0x50] sm:$0xff]
      %v213 = vld [vmem:[%s193 + $0x58] sm:$0xff]
      %v214 = vld [vmem:[%s193 + $0x60] sm:$0xff]
      %v215 = vld [vmem:[%s193 + $0x68] sm:$0xff]
      %v216 = vld [vmem:[%s193 + $0x70] sm:$0xff]
      %v217 = vld [vmem:[%s193 + $0x78] sm:$0xff]
      %v218 = vld [vmem:[%s193 + $0x80] sm:$0xff]
      %v219 = vld [vmem:[%s193 + $0x88] sm:$0xff]
      %v220 = vld [vmem:[%s193 + $0x90] sm:$0xff]
      %v221 = vld [vmem:[%s193 + $0x98] sm:$0xff]
      %v222 = vld [vmem:[%s193 + $0xa0] sm:$0xff]
      %v223 = vld [vmem:[%s193 + $0xa8] sm:$0xff]
      %v224 = vld [vmem:[%s193 + $0xb0] sm:$0xff]
      %v225 = vld [vmem:[%s193 + $0xb8] sm:$0xff]
      %v226 = vld [vmem:[%s193 + $0xc0] sm:$0xff]
      %v227 = vld [vmem:[%s193 + $0xc8] sm:$0xff]
      %v228 = vld [vmem:[%s193 + $0xd0] sm:$0xff]
      %v229 = vld [vmem:[%s193 + $0xd8] sm:$0xff]
      %v230 = vld [vmem:[%s193 + $0xe0] sm:$0xff]
      %v231 = vld [vmem:[%s193 + $0xe8] sm:$0xff]
      %v232 = vld [vmem:[%s193 + $0xf0] sm:$0xff]
      %v233 = vld [vmem:[%s193 + $0xf8] sm:$0xff]
      %v234 = vld [vmem:[%s193 + $0x100] sm:$0xff]
      %v235 = vld [vmem:[%s193 + $0x108] sm:$0xff]
      %v236 = vld [vmem:[%s193 + $0x110] sm:$0xff]
      %v237 = vld [vmem:[%s193 + $0x118] sm:$0xff]
      %v238 = vld [vmem:[%s193 + $0x120] sm:$0xff]
      %v239 = vld [vmem:[%s193 + $0x128] sm:$0xff]
      %v240 = vld [vmem:[%s193 + $0x130] sm:$0xff]
      %v241 = vld [vmem:[%s193 + $0x138] sm:$0xff]
      %v242 = vld [vmem:[%s193 + $0x140] sm:$0xff]
      %v243 = vld [vmem:[%s193 + $0x148] sm:$0xff]
      %v244 = vld [vmem:[%s193 + $0x150] sm:$0xff]
      %v245 = vld [vmem:[%s193 + $0x158] sm:$0xff]
      %v246 = vld [vmem:[%s193 + $0x160] sm:$0xff]
      %v247 = vld [vmem:[%s193 + $0x168] sm:$0xff]
      %v248 = vld [vmem:[%s193 + $0x170] sm:$0xff]
      %v249 = vld [vmem:[%s193 + $0x178] sm:$0xff]
      %v250 = vld [vmem:[%s193 + $0x180] sm:$0xff]
      %v251 = vld [vmem:[%s193 + $0x188] sm:$0xff]
      %v252 = vld [vmem:[%s193 + $0x190] sm:$0xff]
      %v253 = vld [vmem:[%s193 + $0x198] sm:$0xff]
      %v254 = vld [vmem:[%s193 + $0x1a0] sm:$0xff]
      %v255 = vld [vmem:[%s193 + $0x1a8] sm:$0xff]
      %v256 = vld [vmem:[%s193 + $0x1b0] sm:$0xff]
      %v257 = vld [vmem:[%s193 + $0x1b8] sm:$0xff]
      %v258 = vld [vmem:[%s193 + $0x1c0] sm:$0xff]
      %v259 = vld [vmem:[%s193 + $0x1c8] sm:$0xff]
      %v260 = vld [vmem:[%s193 + $0x1d0] sm:$0xff]
      %v261 = vld [vmem:[%s193 + $0x1d8] sm:$0xff]
      %v262 = vld [vmem:[%s193 + $0x1e0] sm:$0xff]
      %v263 = vld [vmem:[%s193 + $0x1e8] sm:$0xff]
      %v264 = vld [vmem:[%s193 + $0x1f0] sm:$0xff]
      %v265 = vld [vmem:[%s193 + $0x1f8] sm:$0xff]
      %v266 = vld [vmem:[%s193 + $0x200] sm:$0xff]
      %v267 = vld [vmem:[%s193 + $0x208] sm:$0xff]
      %v268 = vld [vmem:[%s193 + $0x210] sm:$0xff]
      %v269 = vld [vmem:[%s193 + $0x218] sm:$0xff]
      %v270 = vld [vmem:[%s193 + $0x220] sm:$0xff]
      %v271 = vld [vmem:[%s193 + $0x228] sm:$0xff]
      %v272 = vld [vmem:[%s193 + $0x230] sm:$0xff]
      %v273 = vld [vmem:[%s193 + $0x238] sm:$0xff]
      %v274 = vld [vmem:[%s193 + $0x240] sm:$0xff]
      %v275 = vld [vmem:[%s193 + $0x248] sm:$0xff]
      %v276 = vld [vmem:[%s193 + $0x250] sm:$0xff]
      %v277 = vld [vmem:[%s193 + $0x258] sm:$0xff]
      %v278 = vld [vmem:[%s193 + $0x260] sm:$0xff]
      %v279 = vld [vmem:[%s193 + $0x268] sm:$0xff]
      %v280 = vld [vmem:[%s193 + $0x270] sm:$0xff]
      %v281 = vld [vmem:[%s193 + $0x278] sm:$0xff]
      %v282 = vld [vmem:[%s193 + $0x280] sm:$0xff]
      %v283 = vld [vmem:[%s193 + $0x288] sm:$0xff]
      %v284 = vld [vmem:[%s193 + $0x290] sm:$0xff]
      %v285 = vld [vmem:[%s193 + $0x298] sm:$0xff]
      %v286 = vld [vmem:[%s193 + $0x2a0] sm:$0xff]
      %v287 = vld [vmem:[%s193 + $0x2a8] sm:$0xff]
      %v288 = vld [vmem:[%s193 + $0x2b0] sm:$0xff]
      %v289 = vld [vmem:[%s193 + $0x2b8] sm:$0xff]
      %v290 = vld [vmem:[%s193 + $0x2c0] sm:$0xff]
      %v291 = vld [vmem:[%s193 + $0x2c8] sm:$0xff]
      %v292 = vld [vmem:[%s193 + $0x2d0] sm:$0xff]
      %v293 = vld [vmem:[%s193 + $0x2d8] sm:$0xff]
      %v294 = vld [vmem:[%s193 + $0x2e0] sm:$0xff]
      %v295 = vld [vmem:[%s193 + $0x2e8] sm:$0xff]
      %v296 = vld [vmem:[%s193 + $0x2f0] sm:$0xff]
      %v297 = vld [vmem:[%s193 + $0x2f8] sm:$0xff]
      %v298 = vld [vmem:[%s193 + $0x300] sm:$0xff]
      %v299 = vld [vmem:[%s193 + $0x308] sm:$0xff]
      %v300 = vld [vmem:[%s193 + $0x310] sm:$0xff]
      %v301 = vld [vmem:[%s193 + $0x318] sm:$0xff]
      %v302 = vld [vmem:[%s193 + $0x320] sm:$0xff]
      %v303 = vld [vmem:[%s193 + $0x328] sm:$0xff]
      %v304 = vld [vmem:[%s193 + $0x330] sm:$0xff]
      %v305 = vld [vmem:[%s193 + $0x338] sm:$0xff]
      %v306 = vld [vmem:[%s193 + $0x340] sm:$0xff]
      %v307 = vld [vmem:[%s193 + $0x348] sm:$0xff]
      %v308 = vld [vmem:[%s193 + $0x350] sm:$0xff]
      %v309 = vld [vmem:[%s193 + $0x358] sm:$0xff]
      %v310 = vld [vmem:[%s193 + $0x360] sm:$0xff]
      %v311 = vld [vmem:[%s193 + $0x368] sm:$0xff]
      %v312 = vld [vmem:[%s193 + $0x370] sm:$0xff]
      %v313 = vld [vmem:[%s193 + $0x378] sm:$0xff]
      %v314 = vld [vmem:[%s193 + $0x380] sm:$0xff]
      %v315 = vld [vmem:[%s193 + $0x388] sm:$0xff]
      %v316 = vld [vmem:[%s193 + $0x390] sm:$0xff]
      %v317 = vld [vmem:[%s193 + $0x398] sm:$0xff]
      %v318 = vld [vmem:[%s193 + $0x3a0] sm:$0xff]
      %v319 = vld [vmem:[%s193 + $0x3a8] sm:$0xff]
      %v320 = vld [vmem:[%s193 + $0x3b0] sm:$0xff]
      %v321 = vld [vmem:[%s193 + $0x3b8] sm:$0xff]
      %v322 = vld [vmem:[%s193 + $0x3c0] sm:$0xff]
      %v323 = vld [vmem:[%s193 + $0x3c8] sm:$0xff]
      %v324 = vld [vmem:[%s193 + $0x3d0] sm:$0xff]
      %v325 = vld [vmem:[%s193 + $0x3d8] sm:$0xff]
      %v326 = vld [vmem:[%s193 + $0x3e0] sm:$0xff]
      %v327 = vld [vmem:[%s193 + $0x3e8] sm:$0xff]
      %v328 = vld [vmem:[%s193 + $0x3f0] sm:$0xff]
      %v329 = vld [vmem:[%s193 + $0x3f8] sm:$0xff]
      %v330 = vmax.f32 %v202, 0.0
      %v331 = vmax.f32 %v203, 0.0
      %v332 = vmax.f32 %v204, 0.0
      %v333 = vmax.f32 %v205, 0.0
      %v334 = vmax.f32 %v206, 0.0
      %v335 = vmax.f32 %v207, 0.0
      %v336 = vmax.f32 %v208, 0.0
      %v337 = vmax.f32 %v209, 0.0
      %v338 = vmax.f32 %v210, 0.0
      %v339 = vmax.f32 %v211, 0.0
      %v340 = vmax.f32 %v212, 0.0
      %v341 = vmax.f32 %v213, 0.0
      %v342 = vmax.f32 %v214, 0.0
      %v343 = vmax.f32 %v215, 0.0
      %v344 = vmax.f32 %v216, 0.0
      %v345 = vmax.f32 %v217, 0.0
      %v346 = vmax.f32 %v218, 0.0
      %v347 = vmax.f32 %v219, 0.0
      %v348 = vmax.f32 %v220, 0.0
      %v349 = vmax.f32 %v221, 0.0
      %v350 = vmax.f32 %v222, 0.0
      %v351 = vmax.f32 %v223, 0.0
      %v352 = vmax.f32 %v224, 0.0
      %v353 = vmax.f32 %v225, 0.0
      %v354 = vmax.f32 %v226, 0.0
      %v355 = vmax.f32 %v227, 0.0
      %v356 = vmax.f32 %v228, 0.0
      %v357 = vmax.f32 %v229, 0.0
      %v358 = vmax.f32 %v230, 0.0
      %v359 = vmax.f32 %v231, 0.0
      %v360 = vmax.f32 %v232, 0.0
      %v361 = vmax.f32 %v233, 0.0
      %v362 = vmax.f32 %v234, 0.0
      %v363 = vmax.f32 %v235, 0.0
      %v364 = vmax.f32 %v236, 0.0
      %v365 = vmax.f32 %v237, 0.0
      %v366 = vmax.f32 %v238, 0.0
      %v367 = vmax.f32 %v239, 0.0
      %v368 = vmax.f32 %v240, 0.0
      %v369 = vmax.f32 %v241, 0.0
      %v370 = vmax.f32 %v242, 0.0
      %v371 = vmax.f32 %v243, 0.0
      %v372 = vmax.f32 %v244, 0.0
      %v373 = vmax.f32 %v245, 0.0
      %v374 = vmax.f32 %v246, 0.0
      %v375 = vmax.f32 %v247, 0.0
      %v376 = vmax.f32 %v248, 0.0
      %v377 = vmax.f32 %v249, 0.0
      %v378 = vmax.f32 %v250, 0.0
      %v379 = vmax.f32 %v251, 0.0
      %v380 = vmax.f32 %v252, 0.0
      %v381 = vmax.f32 %v253, 0.0
      %v382 = vmax.f32 %v254, 0.0
      %v383 = vmax.f32 %v255, 0.0
      %v384 = vmax.f32 %v256, 0.0
      %v385 = vmax.f32 %v257, 0.0
      %v386 = vmax.f32 %v258, 0.0
      %v387 = vmax.f32 %v259, 0.0
      %v388 = vmax.f32 %v260, 0.0
      %v389 = vmax.f32 %v261, 0.0
      %v390 = vmax.f32 %v262, 0.0
      %v391 = vmax.f32 %v263, 0.0
      %v392 = vmax.f32 %v264, 0.0
      %v393 = vmax.f32 %v265, 0.0
      %v394 = vmax.f32 %v266, 0.0
      %v395 = vmax.f32 %v267, 0.0
      %v396 = vmax.f32 %v268, 0.0
      %v397 = vmax.f32 %v269, 0.0
      %v398 = vmax.f32 %v270, 0.0
      %v399 = vmax.f32 %v271, 0.0
      %v400 = vmax.f32 %v272, 0.0
      %v401 = vmax.f32 %v273, 0.0
      %v402 = vmax.f32 %v274, 0.0
      %v403 = vmax.f32 %v275, 0.0
      %v404 = vmax.f32 %v276, 0.0
      %v405 = vmax.f32 %v277, 0.0
      %v406 = vmax.f32 %v278, 0.0
      %v407 = vmax.f32 %v279, 0.0
      %v408 = vmax.f32 %v280, 0.0
      %v409 = vmax.f32 %v281, 0.0
      %v410 = vmax.f32 %v282, 0.0
      %v411 = vmax.f32 %v283, 0.0
      %v412 = vmax.f32 %v284, 0.0
      %v413 = vmax.f32 %v285, 0.0
      %v414 = vmax.f32 %v286, 0.0
      %v415 = vmax.f32 %v287, 0.0
      %v416 = vmax.f32 %v288, 0.0
      %v417 = vmax.f32 %v289, 0.0
      %v418 = vmax.f32 %v290, 0.0
      %v419 = vmax.f32 %v291, 0.0
      %v420 = vmax.f32 %v292, 0.0
      %v421 = vmax.f32 %v293, 0.0
      %v422 = vmax.f32 %v294, 0.0
      %v423 = vmax.f32 %v295, 0.0
      %v424 = vmax.f32 %v296, 0.0
      %v425 = vmax.f32 %v297, 0.0
      %v426 = vmax.f32 %v298, 0.0
      %v427 = vmax.f32 %v299, 0.0
      %v428 = vmax.f32 %v300, 0.0
      %v429 = vmax.f32 %v301, 0.0
      %v430 = vmax.f32 %v302, 0.0
      %v431 = vmax.f32 %v303, 0.0
      %v432 = vmax.f32 %v304, 0.0
      %v433 = vmax.f32 %v305, 0.0
      %v434 = vmax.f32 %v306, 0.0
      %v435 = vmax.f32 %v307, 0.0
      %v436 = vmax.f32 %v308, 0.0
      %v437 = vmax.f32 %v309, 0.0
      %v438 = vmax.f32 %v310, 0.0
      %v439 = vmax.f32 %v311, 0.0
      %v440 = vmax.f32 %v312, 0.0
      %v441 = vmax.f32 %v313, 0.0
      %v442 = vmax.f32 %v314, 0.0
      %v443 = vmax.f32 %v315, 0.0
      %v444 = vmax.f32 %v316, 0.0
      %v445 = vmax.f32 %v317, 0.0
      %v446 = vmax.f32 %v318, 0.0
      %v447 = vmax.f32 %v319, 0.0
      %v448 = vmax.f32 %v320, 0.0
      %v449 = vmax.f32 %v321, 0.0
      %v450 = vmax.f32 %v322, 0.0
      %v451 = vmax.f32 %v323, 0.0
      %v452 = vmax.f32 %v324, 0.0
      %v453 = vmax.f32 %v325, 0.0
      %v454 = vmax.f32 %v326, 0.0
      %v455 = vmax.f32 %v327, 0.0
      %v456 = vmax.f32 %v328, 0.0
      %v457 = vmax.f32 %v329, 0.0
      %v458 = vld [vmem:[%s1] sm:$0xff]
      %v459 = vld [vmem:[%s1 + $0x8] sm:$0xff]
      %v460 = vld [vmem:[%s1 + $0x10] sm:$0xff]
      %v461 = vld [vmem:[%s1 + $0x18] sm:$0xff]
      %v462 = vld [vmem:[%s1 + $0x20] sm:$0xff]
      %v463 = vld [vmem:[%s1 + $0x28] sm:$0xff]
      %v464 = vld [vmem:[%s1 + $0x30] sm:$0xff]
      %v465 = vld [vmem:[%s1 + $0x38] sm:$0xff]
      %v466 = vld [vmem:[%s1 + $0x40] sm:$0xff]
      %v467 = vld [vmem:[%s1 + $0x48] sm:$0xff]
      %v468 = vld [vmem:[%s1 + $0x50] sm:$0xff]
      %v469 = vld [vmem:[%s1 + $0x58] sm:$0xff]
      %v470 = vld [vmem:[%s1 + $0x60] sm:$0xff]
      %v471 = vld [vmem:[%s1 + $0x68] sm:$0xff]
      %v472 = vld [vmem:[%s1 + $0x70] sm:$0xff]
      %v473 = vld [vmem:[%s1 + $0x78] sm:$0xff]
      %v474 = vld [vmem:[%s1 + $0x80] sm:$0xff]
      %v475 = vld [vmem:[%s1 + $0x88] sm:$0xff]
      %v476 = vld [vmem:[%s1 + $0x90] sm:$0xff]
      %v477 = vld [vmem:[%s1 + $0x98] sm:$0xff]
      %v478 = vld [vmem:[%s1 + $0xa0] sm:$0xff]
      %v479 = vld [vmem:[%s1 + $0xa8] sm:$0xff]
      %v480 = vld [vmem:[%s1 + $0xb0] sm:$0xff]
      %v481 = vld [vmem:[%s1 + $0xb8] sm:$0xff]
      %v482 = vld [vmem:[%s1 + $0xc0] sm:$0xff]
      %v483 = vld [vmem:[%s1 + $0xc8] sm:$0xff]
      %v484 = vld [vmem:[%s1 + $0xd0] sm:$0xff]
      %v485 = vld [vmem:[%s1 + $0xd8] sm:$0xff]
      %v486 = vld [vmem:[%s1 + $0xe0] sm:$0xff]
      %v487 = vld [vmem:[%s1 + $0xe8] sm:$0xff]
      %v488 = vld [vmem:[%s1 + $0xf0] sm:$0xff]
      %v489 = vld [vmem:[%s1 + $0xf8] sm:$0xff]
      %v490 = vld [vmem:[%s2] sm:$0xff]
      %v491 = vld [vmem:[%s2 + $0x8] sm:$0xff]
      %v492 = vld [vmem:[%s2 + $0x10] sm:$0xff]
      %v493 = vld [vmem:[%s2 + $0x18] sm:$0xff]
      %495 = vset.pattern.permute.xlu0 0
      %496 = vperm.xlu0 %495, %v490
      %v497 = vpop.permute.xlu0 %496
      %500 = vset.pattern.permute.xlu0 0
      %501 = vperm.xlu0 %500, %v491
      %v502 = vpop.permute.xlu0 %501
      %505 = vset.pattern.permute.xlu0 0
      %506 = vperm.xlu0 %505, %v492
      %v507 = vpop.permute.xlu0 %506
      %510 = vset.pattern.permute.xlu0 0
      %511 = vperm.xlu0 %510, %v493
      %v512 = vpop.permute.xlu0 %511
      %514 = vmatprep.subr.mxu0 0.0
      %515 = vmatpush1.msra.mxu0 %v345
      %516 = vmatprep.subr.mxu0 0.0
      %517 = vmatpush1.msra.mxu0 %v344
      %518 = vmatprep.subr.mxu0 0.0
      %519 = vmatpush1.msra.mxu0 %v343
      %520 = vmatprep.subr.mxu0 0.0
      %521 = vmatpush1.msra.mxu0 %v342
      %522 = vmatprep.subr.mxu0 0.0
      %523 = vmatpush1.msra.mxu0 %v341
      %524 = vmatprep.subr.mxu0 0.0
      %525 = vmatpush1.msra.mxu0 %v340
      %526 = vmatprep.subr.mxu0 0.0
      %527 = vmatpush1.msra.mxu0 %v339
      %528 = vmatprep.subr.mxu0 0.0
      %529 = vmatpush1.msra.mxu0 %v338
      %530 = vmatprep.subr.mxu0 0.0
      %531 = vmatpush1.msra.mxu0 %v337
      %532 = vmatprep.subr.mxu0 0.0
      %533 = vmatpush1.msra.mxu0 %v336
      %534 = vmatprep.subr.mxu0 0.0
      %535 = vmatpush1.msra.mxu0 %v335
      %536 = vmatprep.subr.mxu0 0.0
      %537 = vmatpush1.msra.mxu0 %v334
      %538 = vmatprep.subr.mxu0 0.0
      %539 = vmatpush1.msra.mxu0 %v333
      %540 = vmatprep.subr.mxu0 0.0
      %541 = vmatpush1.msra.mxu0 %v332
      %542 = vmatprep.subr.mxu0 0.0
      %543 = vmatpush1.msra.mxu0 %v331
      %544 = vmatprep.subr.mxu0 0.0
      %545 = vmatpush1.msra.mxu0 %v330
      %546 = vmatprep.subr.mxu0 0.0
      %547 = vmatpush2.msra.mxu0 %v361
      %548 = vmatprep.subr.mxu0 0.0
      %549 = vmatpush2.msra.mxu0 %v360
      %550 = vmatprep.subr.mxu0 0.0
      %551 = vmatpush2.msra.mxu0 %v359
      %552 = vmatprep.subr.mxu0 0.0
      %553 = vmatpush2.msra.mxu0 %v358
      %554 = vmatprep.subr.mxu0 0.0
      %555 = vmatpush2.msra.mxu0 %v357
      %556 = vmatprep.subr.mxu0 0.0
      %557 = vmatpush2.msra.mxu0 %v356
      %558 = vmatprep.subr.mxu0 0.0
      %559 = vmatpush2.msra.mxu0 %v355
      %560 = vmatprep.subr.mxu0 0.0
      %561 = vmatpush2.msra.mxu0 %v354
      %562 = vmatprep.subr.mxu0 0.0
      %563 = vmatpush2.msra.mxu0 %v353
      %564 = vmatprep.subr.mxu0 0.0
      %565 = vmatpush2.msra.mxu0 %v352
      %566 = vmatprep.subr.mxu0 0.0
      %567 = vmatpush2.msra.mxu0 %v351
      %568 = vmatprep.subr.mxu0 0.0
      %569 = vmatpush2.msra.mxu0 %v350
      %570 = vmatprep.subr.mxu0 0.0
      %571 = vmatpush2.msra.mxu0 %v349
      %572 = vmatprep.subr.mxu0 0.0
      %573 = vmatpush2.msra.mxu0 %v348
      %574 = vmatprep.subr.mxu0 0.0
      %575 = vmatpush2.msra.mxu0 %v347
      %576 = vmatprep.subr.mxu0 0.0
      %577 = vmatpush2.msra.mxu0 %v346
      %578 = vmatprep.mubr.f32.mxu0 %v459
      %579 = vmatmul.mubr.f32.gmra.mxu0 %v458
      %v580 = vpop.f32.mrf.mxu0
      %v581 = vadd.f32 %v497, %v580
      %v582 = vpop.f32.mrf.mxu0
      %583 = vmatprep.mubr.f32.mxu0 %v467
      %584 = vmatmul.mubr.f32.gmra.mxu0 %v466
      %v585 = vpop.f32.mrf.mxu0
      %v586 = vadd.f32 %v502, %v585
      %v587 = vpop.f32.mrf.mxu0
      %588 = vmatprep.mubr.f32.mxu0 %v475
      %589 = vmatmul.mubr.f32.gmra.mxu0 %v474
      %v590 = vpop.f32.mrf.mxu0
      %v591 = vadd.f32 %v507, %v590
      %v592 = vpop.f32.mrf.mxu0
      %593 = vmatprep.mubr.f32.mxu0 %v483
      %594 = vmatmul.mubr.f32.gmra.mxu0 %v482
      %v595 = vpop.f32.mrf.mxu0
      %v596 = vadd.f32 %v512, %v595
      %v597 = vpop.f32.mrf.mxu0
      %598 = vdwg.mxu0
      %599 = vmatprep.subr.mxu0 0.0
      %600 = vmatpush1.msra.mxu0 %v377
      %601 = vmatprep.subr.mxu0 0.0
      %602 = vmatpush1.msra.mxu0 %v376
      %603 = vmatprep.subr.mxu0 0.0
      %604 = vmatpush1.msra.mxu0 %v375
      %605 = vmatprep.subr.mxu0 0.0
      %606 = vmatpush1.msra.mxu0 %v374
      %607 = vmatprep.subr.mxu0 0.0
      %608 = vmatpush1.msra.mxu0 %v373
      %609 = vmatprep.subr.mxu0 0.0
      %610 = vmatpush1.msra.mxu0 %v372
      %611 = vmatprep.subr.mxu0 0.0
      %612 = vmatpush1.msra.mxu0 %v371
      %613 = vmatprep.subr.mxu0 0.0
      %614 = vmatpush1.msra.mxu0 %v370
      %615 = vmatprep.subr.mxu0 0.0
      %616 = vmatpush1.msra.mxu0 %v369
      %617 = vmatprep.subr.mxu0 0.0
      %618 = vmatpush1.msra.mxu0 %v368
      %619 = vmatprep.subr.mxu0 0.0
      %620 = vmatpush1.msra.mxu0 %v367
      %621 = vmatprep.subr.mxu0 0.0
      %622 = vmatpush1.msra.mxu0 %v366
      %623 = vmatprep.subr.mxu0 0.0
      %624 = vmatpush1.msra.mxu0 %v365
      %625 = vmatprep.subr.mxu0 0.0
      %626 = vmatpush1.msra.mxu0 %v364
      %627 = vmatprep.subr.mxu0 0.0
      %628 = vmatpush1.msra.mxu0 %v363
      %629 = vmatprep.subr.mxu0 0.0
      %630 = vmatpush1.msra.mxu0 %v362
      %631 = vmatprep.subr.mxu0 0.0
      %632 = vmatpush2.msra.mxu0 %v393
      %633 = vmatprep.subr.mxu0 0.0
      %634 = vmatpush2.msra.mxu0 %v392
      %635 = vmatprep.subr.mxu0 0.0
      %636 = vmatpush2.msra.mxu0 %v391
      %637 = vmatprep.subr.mxu0 0.0
      %638 = vmatpush2.msra.mxu0 %v390
      %639 = vmatprep.subr.mxu0 0.0
      %640 = vmatpush2.msra.mxu0 %v389
      %641 = vmatprep.subr.mxu0 0.0
      %642 = vmatpush2.msra.mxu0 %v388
      %643 = vmatprep.subr.mxu0 0.0
      %644 = vmatpush2.msra.mxu0 %v387
      %645 = vmatprep.subr.mxu0 0.0
      %646 = vmatpush2.msra.mxu0 %v386
      %647 = vmatprep.subr.mxu0 0.0
      %648 = vmatpush2.msra.mxu0 %v385
      %649 = vmatprep.subr.mxu0 0.0
      %650 = vmatpush2.msra.mxu0 %v384
      %651 = vmatprep.subr.mxu0 0.0
      %652 = vmatpush2.msra.mxu0 %v383
      %653 = vmatprep.subr.mxu0 0.0
      %654 = vmatpush2.msra.mxu0 %v382
      %655 = vmatprep.subr.mxu0 0.0
      %656 = vmatpush2.msra.mxu0 %v381
      %657 = vmatprep.subr.mxu0 0.0
      %658 = vmatpush2.msra.mxu0 %v380
      %659 = vmatprep.subr.mxu0 0.0
      %660 = vmatpush2.msra.mxu0 %v379
      %661 = vmatprep.subr.mxu0 0.0
      %662 = vmatpush2.msra.mxu0 %v378
      %663 = vmatprep.mubr.f32.mxu0 %v461
      %664 = vmatmul.mubr.f32.gmra.mxu0 %v460
      %v665 = vpop.f32.mrf.mxu0
      %v666 = vadd.f32 %v581, %v665
      %v667 = vpop.f32.mrf.mxu0
      %668 = vmatprep.mubr.f32.mxu0 %v469
      %669 = vmatmul.mubr.f32.gmra.mxu0 %v468
      %v670 = vpop.f32.mrf.mxu0
      %v671 = vadd.f32 %v586, %v670
      %v672 = vpop.f32.mrf.mxu0
      %673 = vmatprep.mubr.f32.mxu0 %v477
      %674 = vmatmul.mubr.f32.gmra.mxu0 %v476
      %v675 = vpop.f32.mrf.mxu0
      %v676 = vadd.f32 %v591, %v675
      %v677 = vpop.f32.mrf.mxu0
      %678 = vmatprep.mubr.f32.mxu0 %v485
      %679 = vmatmul.mubr.f32.gmra.mxu0 %v484
      %v680 = vpop.f32.mrf.mxu0
      %v681 = vadd.f32 %v596, %v680
      %v682 = vpop.f32.mrf.mxu0
      %683 = vdwg.mxu0
      %684 = vmatprep.subr.mxu0 0.0
      %685 = vmatpush1.msra.mxu0 %v409
      %686 = vmatprep.subr.mxu0 0.0
      %687 = vmatpush1.msra.mxu0 %v408
      %688 = vmatprep.subr.mxu0 0.0
      %689 = vmatpush1.msra.mxu0 %v407
      %690 = vmatprep.subr.mxu0 0.0
      %691 = vmatpush1.msra.mxu0 %v406
      %692 = vmatprep.subr.mxu0 0.0
      %693 = vmatpush1.msra.mxu0 %v405
      %694 = vmatprep.subr.mxu0 0.0
      %695 = vmatpush1.msra.mxu0 %v404
      %696 = vmatprep.subr.mxu0 0.0
      %697 = vmatpush1.msra.mxu0 %v403
      %698 = vmatprep.subr.mxu0 0.0
      %699 = vmatpush1.msra.mxu0 %v402
      %700 = vmatprep.subr.mxu0 0.0
      %701 = vmatpush1.msra.mxu0 %v401
      %702 = vmatprep.subr.mxu0 0.0
      %703 = vmatpush1.msra.mxu0 %v400
      %704 = vmatprep.subr.mxu0 0.0
      %705 = vmatpush1.msra.mxu0 %v399
      %706 = vmatprep.subr.mxu0 0.0
      %707 = vmatpush1.msra.mxu0 %v398
      %708 = vmatprep.subr.mxu0 0.0
      %709 = vmatpush1.msra.mxu0 %v397
      %710 = vmatprep.subr.mxu0 0.0
      %711 = vmatpush1.msra.mxu0 %v396
      %712 = vmatprep.subr.mxu0 0.0
      %713 = vmatpush1.msra.mxu0 %v395
      %714 = vmatprep.subr.mxu0 0.0
      %715 = vmatpush1.msra.mxu0 %v394
      %716 = vmatprep.subr.mxu0 0.0
      %717 = vmatpush2.msra.mxu0 %v425
      %718 = vmatprep.subr.mxu0 0.0
      %719 = vmatpush2.msra.mxu0 %v424
      %720 = vmatprep.subr.mxu0 0.0
      %721 = vmatpush2.msra.mxu0 %v423
      %722 = vmatprep.subr.mxu0 0.0
      %723 = vmatpush2.msra.mxu0 %v422
      %724 = vmatprep.subr.mxu0 0.0
      %725 = vmatpush2.msra.mxu0 %v421
      %726 = vmatprep.subr.mxu0 0.0
      %727 = vmatpush2.msra.mxu0 %v420
      %728 = vmatprep.subr.mxu0 0.0
      %729 = vmatpush2.msra.mxu0 %v419
      %730 = vmatprep.subr.mxu0 0.0
      %731 = vmatpush2.msra.mxu0 %v418
      %732 = vmatprep.subr.mxu0 0.0
      %733 = vmatpush2.msra.mxu0 %v417
      %734 = vmatprep.subr.mxu0 0.0
      %735 = vmatpush2.msra.mxu0 %v416
      %736 = vmatprep.subr.mxu0 0.0
      %737 = vmatpush2.msra.mxu0 %v415
      %738 = vmatprep.subr.mxu0 0.0
      %739 = vmatpush2.msra.mxu0 %v414
      %740 = vmatprep.subr.mxu0 0.0
      %741 = vmatpush2.msra.mxu0 %v413
      %742 = vmatprep.subr.mxu0 0.0
      %743 = vmatpush2.msra.mxu0 %v412
      %744 = vmatprep.subr.mxu0 0.0
      %745 = vmatpush2.msra.mxu0 %v411
      %746 = vmatprep.subr.mxu0 0.0
      %747 = vmatpush2.msra.mxu0 %v410
      %748 = vmatprep.mubr.f32.mxu0 %v463
      %749 = vmatmul.mubr.f32.gmra.mxu0 %v462
      %v750 = vpop.f32.mrf.mxu0
      %v751 = vadd.f32 %v666, %v750
      %v752 = vpop.f32.mrf.mxu0
      %753 = vmatprep.mubr.f32.mxu0 %v471
      %754 = vmatmul.mubr.f32.gmra.mxu0 %v470
      %v755 = vpop.f32.mrf.mxu0
      %v756 = vadd.f32 %v671, %v755
      %v757 = vpop.f32.mrf.mxu0
      %758 = vmatprep.mubr.f32.mxu0 %v479
      %759 = vmatmul.mubr.f32.gmra.mxu0 %v478
      %v760 = vpop.f32.mrf.mxu0
      %v761 = vadd.f32 %v676, %v760
      %v762 = vpop.f32.mrf.mxu0
      %763 = vmatprep.mubr.f32.mxu0 %v487
      %764 = vmatmul.mubr.f32.gmra.mxu0 %v486
      %v765 = vpop.f32.mrf.mxu0
      %v766 = vadd.f32 %v681, %v765
      %v767 = vpop.f32.mrf.mxu0
      %768 = vdwg.mxu0
      %769 = vmatprep.subr.mxu0 0.0
      %770 = vmatpush1.msra.mxu0 %v441
      %771 = vmatprep.subr.mxu0 0.0
      %772 = vmatpush1.msra.mxu0 %v440
      %773 = vmatprep.subr.mxu0 0.0
      %774 = vmatpush1.msra.mxu0 %v439
      %775 = vmatprep.subr.mxu0 0.0
      %776 = vmatpush1.msra.mxu0 %v438
      %777 = vmatprep.subr.mxu0 0.0
      %778 = vmatpush1.msra.mxu0 %v437
      %779 = vmatprep.subr.mxu0 0.0
      %780 = vmatpush1.msra.mxu0 %v436
      %781 = vmatprep.subr.mxu0 0.0
      %782 = vmatpush1.msra.mxu0 %v435
      %783 = vmatprep.subr.mxu0 0.0
      %784 = vmatpush1.msra.mxu0 %v434
      %785 = vmatprep.subr.mxu0 0.0
      %786 = vmatpush1.msra.mxu0 %v433
      %787 = vmatprep.subr.mxu0 0.0
      %788 = vmatpush1.msra.mxu0 %v432
      %789 = vmatprep.subr.mxu0 0.0
      %790 = vmatpush1.msra.mxu0 %v431
      %791 = vmatprep.subr.mxu0 0.0
      %792 = vmatpush1.msra.mxu0 %v430
      %793 = vmatprep.subr.mxu0 0.0
      %794 = vmatpush1.msra.mxu0 %v429
      %795 = vmatprep.subr.mxu0 0.0
      %796 = vmatpush1.msra.mxu0 %v428
      %797 = vmatprep.subr.mxu0 0.0
      %798 = vmatpush1.msra.mxu0 %v427
      %799 = vmatprep.subr.mxu0 0.0
      %800 = vmatpush1.msra.mxu0 %v426
      %801 = vmatprep.subr.mxu0 0.0
      %802 = vmatpush2.msra.mxu0 %v457
      %803 = vmatprep.subr.mxu0 0.0
      %804 = vmatpush2.msra.mxu0 %v456
      %805 = vmatprep.subr.mxu0 0.0
      %806 = vmatpush2.msra.mxu0 %v455
      %807 = vmatprep.subr.mxu0 0.0
      %808 = vmatpush2.msra.mxu0 %v454
      %809 = vmatprep.subr.mxu0 0.0
      %810 = vmatpush2.msra.mxu0 %v453
      %811 = vmatprep.subr.mxu0 0.0
      %812 = vmatpush2.msra.mxu0 %v452
      %813 = vmatprep.subr.mxu0 0.0
      %814 = vmatpush2.msra.mxu0 %v451
      %815 = vmatprep.subr.mxu0 0.0
      %816 = vmatpush2.msra.mxu0 %v450
      %817 = vmatprep.subr.mxu0 0.0
      %818 = vmatpush2.msra.mxu0 %v449
      %819 = vmatprep.subr.mxu0 0.0
      %820 = vmatpush2.msra.mxu0 %v448
      %821 = vmatprep.subr.mxu0 0.0
      %822 = vmatpush2.msra.mxu0 %v447
      %823 = vmatprep.subr.mxu0 0.0
      %824 = vmatpush2.msra.mxu0 %v446
      %825 = vmatprep.subr.mxu0 0.0
      %826 = vmatpush2.msra.mxu0 %v445
      %827 = vmatprep.subr.mxu0 0.0
      %828 = vmatpush2.msra.mxu0 %v444
      %829 = vmatprep.subr.mxu0 0.0
      %830 = vmatpush2.msra.mxu0 %v443
      %831 = vmatprep.subr.mxu0 0.0
      %832 = vmatpush2.msra.mxu0 %v442
      %833 = vmatprep.mubr.f32.mxu0 %v465
      %834 = vmatmul.mubr.f32.gmra.mxu0 %v464
      %v835 = vpop.f32.mrf.mxu0
      %v836 = vadd.f32 %v751, %v835
      %v837 = vpop.f32.mrf.mxu0
      %838 = vmatprep.mubr.f32.mxu0 %v473
      %839 = vmatmul.mubr.f32.gmra.mxu0 %v472
      %v840 = vpop.f32.mrf.mxu0
      %v841 = vadd.f32 %v756, %v840
      %v842 = vpop.f32.mrf.mxu0
      %843 = vmatprep.mubr.f32.mxu0 %v481
      %844 = vmatmul.mubr.f32.gmra.mxu0 %v480
      %v845 = vpop.f32.mrf.mxu0
      %v846 = vadd.f32 %v761, %v845
      %v847 = vpop.f32.mrf.mxu0
      %848 = vmatprep.mubr.f32.mxu0 %v489
      %849 = vmatmul.mubr.f32.gmra.mxu0 %v488
      %v850 = vpop.f32.mrf.mxu0
      %v851 = vadd.f32 %v766, %v850
      %v852 = vpop.f32.mrf.mxu0
      %853 = vdwg.mxu0
      %854 = vst [vmem:[%s201] sm:$0xff] %v836
      %855 = vst [vmem:[%s201 + $0x8] sm:$0xff] %v841
      %856 = vst [vmem:[%s201 + $0x10] sm:$0xff] %v846
      %857 = vst [vmem:[%s201 + $0x18] sm:$0xff] %v851
      %p858 = scmp.lt.s32.totalorder %s18, 1
      %s859 = scalar_select %p858, %s18, 1
      %p860 = scmp.lt.s32.totalorder %s19, 0
      %s861 = scalar_select %p860, %s19, 0
      %s862 = smul.addr %s859, 4
      %s863 = sadd.s32 %s861, %s862
      %s864 = smul.addr %s863, 8
      %s865 = scalar_lea.vmem %s3, %s864
      // Predicated region
      $region33: #{_lambda_.4} parent=31 // pred_check
        %p866 = pneg %p116
      $region34: #{_lambda_.4} parent=31 // pred_check_branch
        %868 = sbr.rel (%p866) target = $region36
      $region35: #{_lambda_.4} parent=31 // pred_region
        _
      $region36: #{_lambda_.4} parent=31 // pred_fallthru
        _
    $region32: #{_lambda_.4} parent=5 // pred_fallthru
      _
    %p869 = scmp.le.s32.totalorder 2, %s9
    // Predicated region
    $region37: #{_lambda_.4} parent=5 // pred_check
      %p870 = pneg %p869
    $region38: #{_lambda_.4} parent=5 // pred_check_branch
      %872 = sbr.rel (%p870) target = $region40
    $region39: #{_lambda_.4} parent=5 // pred_region
      %s873 = ssub.s32 %s9, 2
      // Predicated region
      $region41: #{_lambda_.4} parent=39 // pred_check
        %p874 = pneg %p122
      $region42: #{_lambda_.4} parent=39 // pred_check_branch
        %876 = sbr.rel (%p874) target = $region44
      $region43: #{_lambda_.4} parent=39 // pred_region
        %p877 = scmp.lt.s32.totalorder %s20, 1
        %s878 = scalar_select %p877, %s20, 1
        %p879 = scmp.lt.s32.totalorder %s21, 0
        %s880 = scalar_select %p879, %s21, 0
        %s881 = smul.addr %s878, 4
        %s882 = sadd.s32 %s880, %s881
        %s883 = smul.addr %s882, 8
        %s884 = scalar_lea.vmem %s3, %s883
      $region44: #{_lambda_.4} parent=39 // pred_fallthru
        _
    $region40: #{_lambda_.4} parent=5 // pred_fallthru
      _
  $region6: #{_lambda_.4} parent=0 // loop_footer
    %s13 = sadd.s32 1, %s9
  $region7: #{_lambda_.4} parent=0 // loop_footer_branch
    %8 = sbr.rel target = $region3
  $region8: #{_lambda_.4} parent=0 // loop_exit
    _

// kernel: _lambda_.5
$region0: #{_lambda_.5}
  #allocation0 [shape = 'u32[]', space=smem, size = 0x4, offset = 0x4, fixed_abs, tag = 'smem constant byte address 0x4 - core index']
  #allocation1 [shape = 'u32[144,128]{1,0:T(1,128)}', space=vmem, size = 0x12000, scoped, tag = 'internal scratch']
  %s0 = inlined_call_operand.vmem [shape: f32[2,512,128], index: 0, kind: input, shape index: {}]
  %s1 = inlined_call_operand.vmem [shape: f32[16,512], index: 1, kind: input, shape index: {}]
  %s2 = inlined_call_operand.vmem [shape: f32[16,1], index: 2, kind: input, shape index: {}]
  %s3 = inlined_call_operand.vmem [shape: f32[2,16,128], index: 3, kind: output, shape index: {}]
  %s4 = sld [smem:[#allocation0]]
  $region45: #{_lambda_.5} parent=0
    _
  %s6 = ssub.s32 1, %s4
  %s7 = scalar_select 0, %s6, %s4
  loop: start=0, step=1, limit=4
  $region2: #{_lambda_.5} parent=0 // loop_pre_header
    _
  $region3: #{_lambda_.5} parent=0 // loop_header
    %s9 = sphi 0, %s13
    %p10 = scmp.ge.s32.totalorder %s9, 4
    %s16 = sphi 0, %s28
    %s17 = sphi 0, %s24
    %s18 = sphi 0, %s16
    %s19 = sphi 0, %s17
    %s20 = sphi 0, %s18
    %s21 = sphi 0, %s19
    %s33 = sphi 0, %s35
    %s36 = sphi 0, %s33
    %s37 = sphi 0, %s36
    %s53 = sphi 0, %s37
    %s57 = sphi 0, %s57
    %s59 = sphi 0, %s57
    %s60 = sphi 0, %s59
    %s74 = sphi 0, %s60
    %s78 = sphi 0, %s78
    %s80 = sphi 0, %s78
    %s81 = sphi 0, %s80
    %s95 = sphi 0, %s81
    %s103 = sphi 0, %s105
    %s106 = sphi 0, %s103
    %s107 = sphi 0, %s106
    %s123 = sphi 0, %s107
  $region4: #{_lambda_.5} parent=0 // loop_header_branch
    %12 = sbr.rel (%p10) target = $region8
  $region5: #{_lambda_.5} parent=0 // loop_body
    %s14 = ssub.s32 %s9, 1
    %s15 = ssub.s32 %s9, 2
    %s22 = sadd.s32 1, %s17
    %p23 = scmp.ge.s32.totalorder %s22, 1
    %s24 = scalar_select %p23, 0, %s22
    %s25 = sadd.s32 1, %s16
    %s26 = scalar_select %p23, %s25, %s16
    %p27 = scmp.ge.s32.totalorder %s26, 2
    %s28 = scalar_select %p27, 0, %s26
    %s29 = ssub.s32 %s16, %s28
    %s30 = ssub.s32 %s17, %s24
    %s31 = sor.u32 %s29, %s30
    %p32 = scmp.eq.s32.totalorder %s31, 0
    %s34 = sadd.s32 %s33, 1
    %s35 = scalar_select %p32, %s33, %s34
    %p38 = pneg %p32
    %p39 = scmp.eq.s32.totalorder %s9, 1
    %p40 = por %p38, %p39
    %p41 = scmp.ne.s32.totalorder %s33, %s36
    %p42 = scmp.eq.s32.totalorder %s9, 0
    %p43 = por %p41, %p42
    %p44 = scmp.ne.s32.totalorder %s33, %s36
    %p45 = scmp.eq.s32.totalorder %s14, 1
    %p46 = por %p44, %p45
    %p47 = scmp.ne.s32.totalorder %s36, %s37
    %p48 = scmp.eq.s32.totalorder %s14, 0
    %p49 = por %p47, %p48
    %p50 = scmp.ne.s32.totalorder %s36, %s37
    %p51 = scmp.eq.s32.totalorder %s15, 1
    %p52 = por %p50, %p51
    %p54 = scmp.ne.s32.totalorder %s37, %s53
    %p55 = scmp.eq.s32.totalorder %s15, 0
    %p56 = por %p54, %p55
    %s58 = sadd.s32 %s57, 1
    %p61 = scmp.eq.s32.totalorder %s9, 1
    %p62 = scmp.ne.s32.totalorder %s57, %s59
    %p63 = scmp.eq.s32.totalorder %s9, 0
    %p64 = por %p62, %p63
    %p65 = scmp.ne.s32.totalorder %s57, %s59
    %p66 = scmp.eq.s32.totalorder %s14, 1
    %p67 = por %p65, %p66
    %p68 = scmp.ne.s32.totalorder %s59, %s60
    %p69 = scmp.eq.s32.totalorder %s14, 0
    %p70 = por %p68, %p69
    %p71 = scmp.ne.s32.totalorder %s59, %s60
    %p72 = scmp.eq.s32.totalorder %s15, 1
    %p73 = por %p71, %p72
    %p75 = scmp.ne.s32.totalorder %s60, %s74
    %p76 = scmp.eq.s32.totalorder %s15, 0
    %p77 = por %p75, %p76
    %s79 = sadd.s32 %s78, 1
    %p82 = scmp.eq.s32.totalorder %s9, 1
    %p83 = scmp.ne.s32.totalorder %s78, %s80
    %p84 = scmp.eq.s32.totalorder %s9, 0
    %p85 = por %p83, %p84
    %p86 = scmp.ne.s32.totalorder %s78, %s80
    %p87 = scmp.eq.s32.totalorder %s14, 1
    %p88 = por %p86, %p87
    %p89 = scmp.ne.s32.totalorder %s80, %s81
    %p90 = scmp.eq.s32.totalorder %s14, 0
    %p91 = por %p89, %p90
    %p92 = scmp.ne.s32.totalorder %s80, %s81
    %p93 = scmp.eq.s32.totalorder %s15, 1
    %p94 = por %p92, %p93
    %p96 = scmp.ne.s32.totalorder %s81, %s95
    %p97 = scmp.eq.s32.totalorder %s15, 0
    %p98 = por %p96, %p97
    %s99 = ssub.s32 %s16, %s28
    %s100 = ssub.s32 %s17, %s24
    %s101 = sor.u32 %s99, %s100
    %p102 = scmp.eq.s32.totalorder %s101, 0
    %s104 = sadd.s32 %s103, 1
    %s105 = scalar_select %p102, %s103, %s104
    %p108 = pneg %p102
    %p109 = scmp.eq.s32.totalorder %s9, 1
    %p110 = por %p108, %p109
    %p111 = scmp.ne.s32.totalorder %s103, %s106
    %p112 = scmp.eq.s32.totalorder %s9, 0
    %p113 = por %p111, %p112
    %p114 = scmp.ne.s32.totalorder %s103, %s106
    %p115 = scmp.eq.s32.totalorder %s14, 1
    %p116 = por %p114, %p115
    %p117 = scmp.ne.s32.totalorder %s106, %s107
    %p118 = scmp.eq.s32.totalorder %s14, 0
    %p119 = por %p117, %p118
    %p120 = scmp.ne.s32.totalorder %s106, %s107
    %p121 = scmp.eq.s32.totalorder %s15, 1
    %p122 = por %p120, %p121
    %p124 = scmp.ne.s32.totalorder %s107, %s123
    %p125 = scmp.eq.s32.totalorder %s15, 0
    %p126 = por %p124, %p125
    %p127 = scmp.le.s32.totalorder 1, %s9
    %p128 = scmp.lt.s32.totalorder %s9, 3
    %p129 = pnand %p127, %p128
    %p130 = pneg %p129
    // Predicated region
    $region9: #{_lambda_.5} parent=5 // pred_check
      _
    $region10: #{_lambda_.5} parent=5 // pred_check_branch
      %132 = sbr.rel (%p129) target = $region12
    $region11: #{_lambda_.5} parent=5 // pred_region
      %s133 = ssub.s32 %s9, 1
      // Predicated region
      $region13: #{_lambda_.5} parent=11 // pred_check
        %p134 = pneg %p70
      $region14: #{_lambda_.5} parent=11 // pred_check_branch
        %136 = sbr.rel (%p134) target = $region16
      $region15: #{_lambda_.5} parent=11 // pred_region
        _
      $region16: #{_lambda_.5} parent=11 // pred_fallthru
        _
      // Predicated region
      $region17: #{_lambda_.5} parent=11 // pred_check
        %p137 = pneg %p91
      $region18: #{_lambda_.5} parent=11 // pred_check_branch
        %139 = sbr.rel (%p137) target = $region20
      $region19: #{_lambda_.5} parent=11 // pred_region
        _
      $region20: #{_lambda_.5} parent=11 // pred_fallthru
        _
    $region12: #{_lambda_.5} parent=5 // pred_fallthru
      _
    %p140 = scmp.lt.s32.totalorder %s9, 2
    // Predicated region
    $region21: #{_lambda_.5} parent=5 // pred_check
      %p141 = pneg %p140
    $region22: #{_lambda_.5} parent=5 // pred_check_branch
      %143 = sbr.rel (%p141) target = $region24
    $region23: #{_lambda_.5} parent=5 // pred_region
      // Predicated region
      $region25: #{_lambda_.5} parent=23 // pred_check
        %p144 = pneg %p43
      $region26: #{_lambda_.5} parent=23 // pred_check_branch
        %146 = sbr.rel (%p144) target = $region28
      $region27: #{_lambda_.5} parent=23 // pred_region
        %p147 = scmp.lt.s32.totalorder %s16, 1
        %s148 = scalar_select %p147, %s16, 1
        %p149 = scmp.lt.s32.totalorder %s17, 0
        %s150 = scalar_select %p149, %s17, 0
        %s151 = smul.addr %s148, 64
        %s152 = sadd.s32 %s150, %s151
        %s153 = smul.addr %s152, 8
        %s154 = scalar_lea.vmem %s0, %s153
      $region28: #{_lambda_.5} parent=23 // pred_fallthru
        _
    $region24: #{_lambda_.5} parent=5 // pred_fallthru
      _
    %p155 = scmp.le.s32.totalorder 1, %s9
    %p156 = scmp.lt.s32.totalorder %s9, 3
    %p157 = pnand %p155, %p156
    %p158 = pneg %p157
    // Predicated region
    $region29: #{_lambda_.5} parent=5 // pred_check
      _
    $region30: #{_lambda_.5} parent=5 // pred_check_branch
      %160 = sbr.rel (%p157) target = $region32
    $region31: #{_lambda_.5} parent=5 // pred_region
      %s161 = ssub.s32 %s9, 1
      %p162 = scmp.lt.s32.totalorder %s18, 1
      %s163 = scalar_select %p162, %s18, 1
      %p164 = scmp.lt.s32.totalorder %s19, 0
      %s165 = scalar_select %p164, %s19, 0
      %s166 = smul.addr %s163, 64
      %s167 = sadd.s32 %s165, %s166
      %s168 = smul.addr %s167, 8
      %s169 = scalar_lea.vmem %s0, %s168
      %p170 = pneg %p49
      %p171 = pneg %p46
      %p172 = pneg %p70
      %p173 = pneg %p67
      %p174 = pneg %p91
      %p175 = pneg %p88
      %p176 = pneg %p119
      %p177 = pneg %p116
      %p178 = scmp.lt.s32.totalorder %s18, 1
      %s179 = scalar_select %p178, %s18, 1
      %p180 = scmp.lt.s32.totalorder %s19, 0
      %s181 = scalar_select %p180, %s19, 0
      %s182 = smul.addr %s179, 2
      %s183 = sadd.s32 %s181, %s182
      %s184 = smul.addr %s183, 8
      %s185 = scalar_lea.vmem %s3, %s184
      %p186 = scmp.lt.s32.totalorder %s18, 1
      %s187 = scalar_select %p186, %s18, 1
      %p188 = scmp.lt.s32.totalorder %s19, 0
      %s189 = scalar_select %p188, %s19, 0
      %s190 = smul.addr %s187, 64
      %s191 = sadd.s32 %s189, %s190
      %s192 = smul.addr %s191, 8
      %s193 = scalar_lea.vmem %s0, %s192
      %p194 = scmp.lt.s32.totalorder %s18, 1
      %s195 = scalar_select %p194, %s18, 1
      %p196 = scmp.lt.s32.totalorder %s19, 0
      %s197 = scalar_select %p196, %s19, 0
      %s198 = smul.addr %s195, 2
      %s199 = sadd.s32 %s197, %s198
      %s200 = smul.addr %s199, 8
      %s201 = scalar_lea.vmem %s3, %s200
      %v202 = vld [vmem:[%s193] sm:$0xff]
      %v203 = vld [vmem:[%s193 + $0x8] sm:$0xff]
      %v204 = vld [vmem:[%s193 + $0x10] sm:$0xff]
      %v205 = vld [vmem:[%s193 + $0x18] sm:$0xff]
      %v206 = vld [vmem:[%s193 + $0x20] sm:$0xff]
      %v207 = vld [vmem:[%s193 + $0x28] sm:$0xff]
      %v208 = vld [vmem:[%s193 + $0x30] sm:$0xff]
      %v209 = vld [vmem:[%s193 + $0x38] sm:$0xff]
      %v210 = vld [vmem:[%s193 + $0x40] sm:$0xff]
      %v211 = vld [vmem:[%s193 + $0x48] sm:$0xff]
      %v212 = vld [vmem:[%s193 + $0x50] sm:$0xff]
      %v213 = vld [vmem:[%s193 + $0x58] sm:$0xff]
      %v214 = vld [vmem:[%s193 + $0x60] sm:$0xff]
      %v215 = vld [vmem:[%s193 + $0x68] sm:$0xff]
      %v216 = vld [vmem:[%s193 + $0x70] sm:$0xff]
      %v217 = vld [vmem:[%s193 + $0x78] sm:$0xff]
      %v218 = vld [vmem:[%s193 + $0x80] sm:$0xff]
      %v219 = vld [vmem:[%s193 + $0x88] sm:$0xff]
      %v220 = vld [vmem:[%s193 + $0x90] sm:$0xff]
      %v221 = vld [vmem:[%s193 + $0x98] sm:$0xff]
      %v222 = vld [vmem:[%s193 + $0xa0] sm:$0xff]
      %v223 = vld [vmem:[%s193 + $0xa8] sm:$0xff]
      %v224 = vld [vmem:[%s193 + $0xb0] sm:$0xff]
      %v225 = vld [vmem:[%s193 + $0xb8] sm:$0xff]
      %v226 = vld [vmem:[%s193 + $0xc0] sm:$0xff]
      %v227 = vld [vmem:[%s193 + $0xc8] sm:$0xff]
      %v228 = vld [vmem:[%s193 + $0xd0] sm:$0xff]
      %v229 = vld [vmem:[%s193 + $0xd8] sm:$0xff]
      %v230 = vld [vmem:[%s193 + $0xe0] sm:$0xff]
      %v231 = vld [vmem:[%s193 + $0xe8] sm:$0xff]
      %v232 = vld [vmem:[%s193 + $0xf0] sm:$0xff]
      %v233 = vld [vmem:[%s193 + $0xf8] sm:$0xff]
      %v234 = vld [vmem:[%s193 + $0x100] sm:$0xff]
      %v235 = vld [vmem:[%s193 + $0x108] sm:$0xff]
      %v236 = vld [vmem:[%s193 + $0x110] sm:$0xff]
      %v237 = vld [vmem:[%s193 + $0x118] sm:$0xff]
      %v238 = vld [vmem:[%s193 + $0x120] sm:$0xff]
      %v239 = vld [vmem:[%s193 + $0x128] sm:$0xff]
      %v240 = vld [vmem:[%s193 + $0x130] sm:$0xff]
      %v241 = vld [vmem:[%s193 + $0x138] sm:$0xff]
      %v242 = vld [vmem:[%s193 + $0x140] sm:$0xff]
      %v243 = vld [vmem:[%s193 + $0x148] sm:$0xff]
      %v244 = vld [vmem:[%s193 + $0x150] sm:$0xff]
      %v245 = vld [vmem:[%s193 + $0x158] sm:$0xff]
      %v246 = vld [vmem:[%s193 + $0x160] sm:$0xff]
      %v247 = vld [vmem:[%s193 + $0x168] sm:$0xff]
      %v248 = vld [vmem:[%s193 + $0x170] sm:$0xff]
      %v249 = vld [vmem:[%s193 + $0x178] sm:$0xff]
      %v250 = vld [vmem:[%s193 + $0x180] sm:$0xff]
      %v251 = vld [vmem:[%s193 + $0x188] sm:$0xff]
      %v252 = vld [vmem:[%s193 + $0x190] sm:$0xff]
      %v253 = vld [vmem:[%s193 + $0x198] sm:$0xff]
      %v254 = vld [vmem:[%s193 + $0x1a0] sm:$0xff]
      %v255 = vld [vmem:[%s193 + $0x1a8] sm:$0xff]
      %v256 = vld [vmem:[%s193 + $0x1b0] sm:$0xff]
      %v257 = vld [vmem:[%s193 + $0x1b8] sm:$0xff]
      %v258 = vld [vmem:[%s193 + $0x1c0] sm:$0xff]
      %v259 = vld [vmem:[%s193 + $0x1c8] sm:$0xff]
      %v260 = vld [vmem:[%s193 + $0x1d0] sm:$0xff]
      %v261 = vld [vmem:[%s193 + $0x1d8] sm:$0xff]
      %v262 = vld [vmem:[%s193 + $0x1e0] sm:$0xff]
      %v263 = vld [vmem:[%s193 + $0x1e8] sm:$0xff]
      %v264 = vld [vmem:[%s193 + $0x1f0] sm:$0xff]
      %v265 = vld [vmem:[%s193 + $0x1f8] sm:$0xff]
      %v266 = vmax.f32 %v202, 0.0
      %v267 = vmax.f32 %v203, 0.0
      %v268 = vmax.f32 %v204, 0.0
      %v269 = vmax.f32 %v205, 0.0
      %v270 = vmax.f32 %v206, 0.0
      %v271 = vmax.f32 %v207, 0.0
      %v272 = vmax.f32 %v208, 0.0
      %v273 = vmax.f32 %v209, 0.0
      %v274 = vmax.f32 %v210, 0.0
      %v275 = vmax.f32 %v211, 0.0
      %v276 = vmax.f32 %v212, 0.0
      %v277 = vmax.f32 %v213, 0.0
      %v278 = vmax.f32 %v214, 0.0
      %v279 = vmax.f32 %v215, 0.0
      %v280 = vmax.f32 %v216, 0.0
      %v281 = vmax.f32 %v217, 0.0
      %v282 = vmax.f32 %v218, 0.0
      %v283 = vmax.f32 %v219, 0.0
      %v284 = vmax.f32 %v220, 0.0
      %v285 = vmax.f32 %v221, 0.0
      %v286 = vmax.f32 %v222, 0.0
      %v287 = vmax.f32 %v223, 0.0
      %v288 = vmax.f32 %v224, 0.0
      %v289 = vmax.f32 %v225, 0.0
      %v290 = vmax.f32 %v226, 0.0
      %v291 = vmax.f32 %v227, 0.0
      %v292 = vmax.f32 %v228, 0.0
      %v293 = vmax.f32 %v229, 0.0
      %v294 = vmax.f32 %v230, 0.0
      %v295 = vmax.f32 %v231, 0.0
      %v296 = vmax.f32 %v232, 0.0
      %v297 = vmax.f32 %v233, 0.0
      %v298 = vmax.f32 %v234, 0.0
      %v299 = vmax.f32 %v235, 0.0
      %v300 = vmax.f32 %v236, 0.0
      %v301 = vmax.f32 %v237, 0.0
      %v302 = vmax.f32 %v238, 0.0
      %v303 = vmax.f32 %v239, 0.0
      %v304 = vmax.f32 %v240, 0.0
      %v305 = vmax.f32 %v241, 0.0
      %v306 = vmax.f32 %v242, 0.0
      %v307 = vmax.f32 %v243, 0.0
      %v308 = vmax.f32 %v244, 0.0
      %v309 = vmax.f32 %v245, 0.0
      %v310 = vmax.f32 %v246, 0.0
      %v311 = vmax.f32 %v247, 0.0
      %v312 = vmax.f32 %v248, 0.0
      %v313 = vmax.f32 %v249, 0.0
      %v314 = vmax.f32 %v250, 0.0
      %v315 = vmax.f32 %v251, 0.0
      %v316 = vmax.f32 %v252, 0.0
      %v317 = vmax.f32 %v253, 0.0
      %v318 = vmax.f32 %v254, 0.0
      %v319 = vmax.f32 %v255, 0.0
      %v320 = vmax.f32 %v256, 0.0
      %v321 = vmax.f32 %v257, 0.0
      %v322 = vmax.f32 %v258, 0.0
      %v323 = vmax.f32 %v259, 0.0
      %v324 = vmax.f32 %v260, 0.0
      %v325 = vmax.f32 %v261, 0.0
      %v326 = vmax.f32 %v262, 0.0
      %v327 = vmax.f32 %v263, 0.0
      %v328 = vmax.f32 %v264, 0.0
      %v329 = vmax.f32 %v265, 0.0
      %v330 = vld [vmem:[%s1] sm:$0xff]
      %v331 = vld [vmem:[%s1 + $0x8] sm:$0xff]
      %v332 = vld [vmem:[%s1 + $0x10] sm:$0xff]
      %v333 = vld [vmem:[%s1 + $0x18] sm:$0xff]
      %v334 = vld [vmem:[%s1 + $0x20] sm:$0xff]
      %v335 = vld [vmem:[%s1 + $0x28] sm:$0xff]
      %v336 = vld [vmem:[%s1 + $0x30] sm:$0xff]
      %v337 = vld [vmem:[%s1 + $0x38] sm:$0xff]
      %v338 = vld [vmem:[%s2] sm:$0xff]
      %v339 = vld [vmem:[%s2 + $0x8] sm:$0xff]
      %341 = vset.pattern.permute.xlu0 0
      %342 = vperm.xlu0 %341, %v338
      %v343 = vpop.permute.xlu0 %342
      %346 = vset.pattern.permute.xlu0 0
      %347 = vperm.xlu0 %346, %v339
      %v348 = vpop.permute.xlu0 %347
      %350 = vmatprep.subr.mxu0 0.0
      %351 = vmatpush1.msra.mxu0 %v281
      %352 = vmatprep.subr.mxu0 0.0
      %353 = vmatpush1.msra.mxu0 %v280
      %354 = vmatprep.subr.mxu0 0.0
      %355 = vmatpush1.msra.mxu0 %v279
      %356 = vmatprep.subr.mxu0 0.0
      %357 = vmatpush1.msra.mxu0 %v278
      %358 = vmatprep.subr.mxu0 0.0
      %359 = vmatpush1.msra.mxu0 %v277
      %360 = vmatprep.subr.mxu0 0.0
      %361 = vmatpush1.msra.mxu0 %v276
      %362 = vmatprep.subr.mxu0 0.0
      %363 = vmatpush1.msra.mxu0 %v275
      %364 = vmatprep.subr.mxu0 0.0
      %365 = vmatpush1.msra.mxu0 %v274
      %366 = vmatprep.subr.mxu0 0.0
      %367 = vmatpush1.msra.mxu0 %v273
      %368 = vmatprep.subr.mxu0 0.0
      %369 = vmatpush1.msra.mxu0 %v272
      %370 = vmatprep.subr.mxu0 0.0
      %371 = vmatpush1.msra.mxu0 %v271
      %372 = vmatprep.subr.mxu0 0.0
      %373 = vmatpush1.msra.mxu0 %v270
      %374 = vmatprep.subr.mxu0 0.0
      %375 = vmatpush1.msra.mxu0 %v269
      %376 = vmatprep.subr.mxu0 0.0
      %377 = vmatpush1.msra.mxu0 %v268
      %378 = vmatprep.subr.mxu0 0.0
      %379 = vmatpush1.msra.mxu0 %v267
      %380 = vmatprep.subr.mxu0 0.0
      %381 = vmatpush1.msra.mxu0 %v266
      %382 = vmatprep.subr.mxu0 0.0
      %383 = vmatpush2.msra.mxu0 %v297
      %384 = vmatprep.subr.mxu0 0.0
      %385 = vmatpush2.msra.mxu0 %v296
      %386 = vmatprep.subr.mxu0 0.0
      %387 = vmatpush2.msra.mxu0 %v295
      %388 = vmatprep.subr.mxu0 0.0
      %389 = vmatpush2.msra.mxu0 %v294
      %390 = vmatprep.subr.mxu0 0.0
      %391 = vmatpush2.msra.mxu0 %v293
      %392 = vmatprep.subr.mxu0 0.0
      %393 = vmatpush2.msra.mxu0 %v292
      %394 = vmatprep.subr.mxu0 0.0
      %395 = vmatpush2.msra.mxu0 %v291
      %396 = vmatprep.subr.mxu0 0.0
      %397 = vmatpush2.msra.mxu0 %v290
      %398 = vmatprep.subr.mxu0 0.0
      %399 = vmatpush2.msra.mxu0 %v289
      %400 = vmatprep.subr.mxu0 0.0
      %401 = vmatpush2.msra.mxu0 %v288
      %402 = vmatprep.subr.mxu0 0.0
      %403 = vmatpush2.msra.mxu0 %v287
      %404 = vmatprep.subr.mxu0 0.0
      %405 = vmatpush2.msra.mxu0 %v286
      %406 = vmatprep.subr.mxu0 0.0
      %407 = vmatpush2.msra.mxu0 %v285
      %408 = vmatprep.subr.mxu0 0.0
      %409 = vmatpush2.msra.mxu0 %v284
      %410 = vmatprep.subr.mxu0 0.0
      %411 = vmatpush2.msra.mxu0 %v283
      %412 = vmatprep.subr.mxu0 0.0
      %413 = vmatpush2.msra.mxu0 %v282
      %414 = vmatprep.mubr.f32.mxu0 %v331
      %415 = vmatmul.mubr.f32.gmra.mxu0 %v330
      %v416 = vpop.f32.mrf.mxu0
      %v417 = vadd.f32 %v343, %v416
      %v418 = vpop.f32.mrf.mxu0
      %419 = vmatprep.mubr.f32.mxu0 %v335
      %420 = vmatmul.mubr.f32.gmra.mxu0 %v334
      %v421 = vpop.f32.mrf.mxu0
      %v422 = vadd.f32 %v348, %v421
      %v423 = vpop.f32.mrf.mxu0
      %424 = vdwg.mxu0
      %425 = vmatprep.subr.mxu0 0.0
      %426 = vmatpush1.msra.mxu0 %v313
      %427 = vmatprep.subr.mxu0 0.0
      %428 = vmatpush1.msra.mxu0 %v312
      %429 = vmatprep.subr.mxu0 0.0
      %430 = vmatpush1.msra.mxu0 %v311
      %431 = vmatprep.subr.mxu0 0.0
      %432 = vmatpush1.msra.mxu0 %v310
      %433 = vmatprep.subr.mxu0 0.0
      %434 = vmatpush1.msra.mxu0 %v309
      %435 = vmatprep.subr.mxu0 0.0
      %436 = vmatpush1.msra.mxu0 %v308
      %437 = vmatprep.subr.mxu0 0.0
      %438 = vmatpush1.msra.mxu0 %v307
      %439 = vmatprep.subr.mxu0 0.0
      %440 = vmatpush1.msra.mxu0 %v306
      %441 = vmatprep.subr.mxu0 0.0
      %442 = vmatpush1.msra.mxu0 %v305
      %443 = vmatprep.subr.mxu0 0.0
      %444 = vmatpush1.msra.mxu0 %v304
      %445 = vmatprep.subr.mxu0 0.0
      %446 = vmatpush1.msra.mxu0 %v303
      %447 = vmatprep.subr.mxu0 0.0
      %448 = vmatpush1.msra.mxu0 %v302
      %449 = vmatprep.subr.mxu0 0.0
      %450 = vmatpush1.msra.mxu0 %v301
      %451 = vmatprep.subr.mxu0 0.0
      %452 = vmatpush1.msra.mxu0 %v300
      %453 = vmatprep.subr.mxu0 0.0
      %454 = vmatpush1.msra.mxu0 %v299
      %455 = vmatprep.subr.mxu0 0.0
      %456 = vmatpush1.msra.mxu0 %v298
      %457 = vmatprep.subr.mxu0 0.0
      %458 = vmatpush2.msra.mxu0 %v329
      %459 = vmatprep.subr.mxu0 0.0
      %460 = vmatpush2.msra.mxu0 %v328
      %461 = vmatprep.subr.mxu0 0.0
      %462 = vmatpush2.msra.mxu0 %v327
      %463 = vmatprep.subr.mxu0 0.0
      %464 = vmatpush2.msra.mxu0 %v326
      %465 = vmatprep.subr.mxu0 0.0
      %466 = vmatpush2.msra.mxu0 %v325
      %467 = vmatprep.subr.mxu0 0.0
      %468 = vmatpush2.msra.mxu0 %v324
      %469 = vmatprep.subr.mxu0 0.0
      %470 = vmatpush2.msra.mxu0 %v323
      %471 = vmatprep.subr.mxu0 0.0
      %472 = vmatpush2.msra.mxu0 %v322
      %473 = vmatprep.subr.mxu0 0.0
      %474 = vmatpush2.msra.mxu0 %v321
      %475 = vmatprep.subr.mxu0 0.0
      %476 = vmatpush2.msra.mxu0 %v320
      %477 = vmatprep.subr.mxu0 0.0
      %478 = vmatpush2.msra.mxu0 %v319
      %479 = vmatprep.subr.mxu0 0.0
      %480 = vmatpush2.msra.mxu0 %v318
      %481 = vmatprep.subr.mxu0 0.0
      %482 = vmatpush2.msra.mxu0 %v317
      %483 = vmatprep.subr.mxu0 0.0
      %484 = vmatpush2.msra.mxu0 %v316
      %485 = vmatprep.subr.mxu0 0.0
      %486 = vmatpush2.msra.mxu0 %v315
      %487 = vmatprep.subr.mxu0 0.0
      %488 = vmatpush2.msra.mxu0 %v314
      %489 = vmatprep.mubr.f32.mxu0 %v333
      %490 = vmatmul.mubr.f32.gmra.mxu0 %v332
      %v491 = vpop.f32.mrf.mxu0
      %v492 = vadd.f32 %v417, %v491
      %v493 = vpop.f32.mrf.mxu0
      %494 = vmatprep.mubr.f32.mxu0 %v337
      %495 = vmatmul.mubr.f32.gmra.mxu0 %v336
      %v496 = vpop.f32.mrf.mxu0
      %v497 = vadd.f32 %v422, %v496
      %v498 = vpop.f32.mrf.mxu0
      %499 = vdwg.mxu0
      %500 = vst [vmem:[%s201] sm:$0xff] %v492
      %501 = vst [vmem:[%s201 + $0x8] sm:$0xff] %v497
      %p502 = scmp.lt.s32.totalorder %s18, 1
      %s503 = scalar_select %p502, %s18, 1
      %p504 = scmp.lt.s32.totalorder %s19, 0
      %s505 = scalar_select %p504, %s19, 0
      %s506 = smul.addr %s503, 2
      %s507 = sadd.s32 %s505, %s506
      %s508 = smul.addr %s507, 8
      %s509 = scalar_lea.vmem %s3, %s508
      // Predicated region
      $region33: #{_lambda_.5} parent=31 // pred_check
        %p510 = pneg %p116
      $region34: #{_lambda_.5} parent=31 // pred_check_branch
        %512 = sbr.rel (%p510) target = $region36
      $region35: #{_lambda_.5} parent=31 // pred_region
        _
      $region36: #{_lambda_.5} parent=31 // pred_fallthru
        _
    $region32: #{_lambda_.5} parent=5 // pred_fallthru
      _
    %p513 = scmp.le.s32.totalorder 2, %s9
    // Predicated region
    $region37: #{_lambda_.5} parent=5 // pred_check
      %p514 = pneg %p513
    $region38: #{_lambda_.5} parent=5 // pred_check_branch
      %516 = sbr.rel (%p514) target = $region40
    $region39: #{_lambda_.5} parent=5 // pred_region
      %s517 = ssub.s32 %s9, 2
      // Predicated region
      $region41: #{_lambda_.5} parent=39 // pred_check
        %p518 = pneg %p122
      $region42: #{_lambda_.5} parent=39 // pred_check_branch
        %520 = sbr.rel (%p518) target = $region44
      $region43: #{_lambda_.5} parent=39 // pred_region
        %p521 = scmp.lt.s32.totalorder %s20, 1
        %s522 = scalar_select %p521, %s20, 1
        %p523 = scmp.lt.s32.totalorder %s21, 0
        %s524 = scalar_select %p523, %s21, 0
        %s525 = smul.addr %s522, 2
        %s526 = sadd.s32 %s524, %s525
        %s527 = smul.addr %s526, 8
        %s528 = scalar_lea.vmem %s3, %s527
      $region44: #{_lambda_.5} parent=39 // pred_fallthru
        _
    $region40: #{_lambda_.5} parent=5 // pred_fallthru
      _
  $region6: #{_lambda_.5} parent=0 // loop_footer
    %s13 = sadd.s32 1, %s9
  $region7: #{_lambda_.5} parent=0 // loop_footer_branch
    %8 = sbr.rel target = $region3
  $region8: #{_lambda_.5} parent=0 // loop_exit
    _

</llo_original>
